<compile_context>
chip_gen: v7x
topology: tpu7x:2x2x1
jax: 0.10.0
libtpu: 0.0.40
codegen_flags: <defaults>
</compile_context>

<pallas_src>
import numpy as np
import jax
import jax.numpy as jnp
from jax.experimental import pallas as pl
from jax.experimental.pallas import tpu as pltpu

FACE_ID_FEAT_SIZE = 204
H1 = 512
H2 = 256
LEAKY_SLOPE = 0.02


# --------------------------------- kernel -----------------------------------
def _leaky_relu(x):
    return jnp.where(x >= 0, x, LEAKY_SLOPE * x)


def fl_d_kernel(x_ref, w1_ref, b1_ref, w2_ref, b2_ref, w3t_ref, b3_ref, out_ref):
    # Activations: (TM, 204) f32 in VMEM -> bf16 for the MXU; accumulate f32.
    x = x_ref[...].astype(jnp.bfloat16)
    h = jnp.dot(x, w1_ref[...], preferred_element_type=jnp.float32) + b1_ref[...]
    h = _leaky_relu(h).astype(jnp.bfloat16)                      # (TM, 512)
    h = jnp.dot(h, w2_ref[...], preferred_element_type=jnp.float32) + b2_ref[...]
    h = _leaky_relu(h).astype(jnp.bfloat16)                      # (TM, 256)
    # Final layer as w3^T (1,256) contracted against h's feature dim:
    # result is (1, TM) -> lane-dense, unmasked row store.
    d = jax.lax.dot_general(
        w3t_ref[...], h,
        dimension_numbers=(((1,), (1,)), ((), ())),
        preferred_element_type=jnp.float32)                      # (1, TM)
    out_ref[...] = d + b3_ref[...]


# -------------------------------- wrapper ------------------------------------
def _const_spec(shape):
    return pl.BlockSpec(shape, lambda i: (0,) * len(shape))


def prepare_kernel_params(params):
    """One-time conversion of f32 module weights into the kernel layout:
    bf16 matmul weights (halves weight DMA), f32 biases, w3 pre-transposed."""
    return {
        "w1": params["w1"].astype(jnp.bfloat16),     # (204, 512)
        "b1": params["b1"].astype(jnp.float32),      # (1, 512)
        "w2": params["w2"].astype(jnp.bfloat16),     # (512, 256)
        "b2": params["b2"].astype(jnp.float32),      # (1, 256)
        "w3t": params["w3"].T.astype(jnp.bfloat16),  # (1, 256)
        "b3": params["b3"].astype(jnp.float32),      # (1, 1)
    }


def fl_d_forward(kparams, feat):
    """feat: (..., 204) -> (..., 1), same semantics as nn.Sequential fl_D."""
    lead = feat.shape[:-1]
    N = int(np.prod(lead)) if lead else 1
    x = feat.reshape(N, FACE_ID_FEAT_SIZE).astype(jnp.float32)

    # Row-tile selection (see header comments).
    if N >= 256:
        TM = 256
    elif N >= 128:
        TM = 128
    else:
        TM = N
    grid = pl.cdiv(N, TM)

    flops = 2 * N * (FACE_ID_FEAT_SIZE * H1 + H1 * H2 + H2 * 1)
    bytes_accessed = (N * FACE_ID_FEAT_SIZE * 4 + N * 4                  # acts in/out
                      + 2 * (FACE_ID_FEAT_SIZE * H1 + H1 * H2 + H2)      # bf16 weights
                      + 4 * (H1 + H2 + 1))                               # f32 biases
    cost = pl.CostEstimate(flops=flops, transcendentals=0,
                           bytes_accessed=bytes_accessed)

    out = pl.pallas_call(
        fl_d_kernel,
        out_shape=jax.ShapeDtypeStruct((1, N), jnp.float32),
        grid_spec=pltpu.PrefetchScalarGridSpec(
            num_scalar_prefetch=0,
            grid=(grid,),
            in_specs=[
                # No HBM-side padding: 204 == full last dim is a legal block.
                pl.BlockSpec((TM, FACE_ID_FEAT_SIZE), lambda i: (i, 0)),
                _const_spec((FACE_ID_FEAT_SIZE, H1)),   # w1 (resident, bf16)
                _const_spec((1, H1)),                   # b1
                _const_spec((H1, H2)),                  # w2 (resident, bf16)
                _const_spec((1, H2)),                   # b2
                _const_spec((1, H2)),                   # w3^T (resident, bf16)
                _const_spec((1, 1)),                    # b3
            ],
            # Lane-dense output: (1, TM) slices of the (1, N) result row.
            out_specs=pl.BlockSpec((1, TM), lambda i: (0, i)),
        ),
        compiler_params=pltpu.CompilerParams(
            dimension_semantics=("parallel",),
            vmem_limit_bytes=32 * 1024 * 1024,
        ),
        cost_estimate=cost,
    )(x, kparams["w1"], kparams["b1"], kparams["w2"], kparams["b2"],
      kparams["w3t"], kparams["b3"])

    return out[0].reshape(*lead, 1)


# ------------------------------ parameter init --------------------------------
def init_params(key):
    ks = jax.random.split(key, 6)

    def w(k, shape, scale=0.05):
        return scale * jax.random.normal(k, shape, dtype=jnp.float32)

    return {
        "w1": w(ks[0], (FACE_ID_FEAT_SIZE, H1)),
        "b1": w(ks[1], (1, H1), 0.01),
        "w2": w(ks[2], (H1, H2)),
        "b2": w(ks[3], (1, H2), 0.01),
        "w3": w(ks[4], (H2, 1)),
        "b3": w(ks[5], (1, 1), 0.01),
    }


# --------------------------- pure-JAX reference -------------------------------
def reference_forward(params, feat):
    HP = jax.lax.Precision.HIGHEST
    h = jnp.dot(feat, params["w1"], precision=HP) + params["b1"]
    h = jnp.where(h >= 0, h, LEAKY_SLOPE * h)
    h = jnp.dot(h, params["w2"], precision=HP) + params["b2"]
    h = jnp.where(h >= 0, h, LEAKY_SLOPE * h)
    return jnp.dot(h, params["w3"], precision=HP) + params["b3"]


# ----------------------------------- main -------------------------------------
if __name__ == "__main__":
    key = jax.random.PRNGKey(0)
    k1, k2 = jax.random.split(key)

    # (batch=2, seq=128, feat=204) -> 256 rows -> one TM=256 tile (grid=1).
    feat = jax.random.normal(k1, (2, 128, FACE_ID_FEAT_SIZE), dtype=jnp.float32)
    params = init_params(k2)
    kparams = prepare_kernel_params(params)

    out = jax.block_until_ready(fl_d_forward(kparams, feat))
    ref = jax.block_until_ready(reference_forward(params, feat))

    assert out.shape == (2, 128, 1), out.shape
    # bf16 weights/activations on the MXU vs f32 HIGHEST reference:
    # observed error is a few 1e-3; 2e-2 keeps a comfortable margin.
    np.testing.assert_allclose(np.asarray(out), np.asarray(ref), rtol=2e-2, atol=2e-2)
    print("KERNEL_OK")
</pallas_src>

<mosaic_0001>
module attributes {stable_mosaic.version = 11 : i64} {
  func.func @fl_d_kernel(%arg0: i32, %arg1: memref<256x204xf32, #tpu.memory_space<vmem>>, %arg2: memref<204x512xbf16, #tpu.memory_space<vmem>>, %arg3: memref<1x512xf32, #tpu.memory_space<vmem>>, %arg4: memref<512x256xbf16, #tpu.memory_space<vmem>>, %arg5: memref<1x256xf32, #tpu.memory_space<vmem>>, %arg6: memref<1x256xbf16, #tpu.memory_space<vmem>>, %arg7: memref<1x1xf32, #tpu.memory_space<vmem>>, %arg8: memref<1x256xf32, #tpu.memory_space<vmem>>) attributes {dimension_semantics = [#tpu.dimension_semantics<parallel>], iteration_bounds = array<i64: 1>, scalar_prefetch = 0 : i64, scratch_operands = 0 : i64, tpu.core_type = #tpu.core_type<tc>, window_params = [{transform_indices = @transform_0, window_bounds = array<i64: 256, 204>}, {pipeline_mode = #tpu.pipeline_mode<synchronous>, transform_indices = @transform_1, window_bounds = array<i64: 204, 512>}, {pipeline_mode = #tpu.pipeline_mode<synchronous>, transform_indices = @transform_2, window_bounds = array<i64: 1, 512>}, {pipeline_mode = #tpu.pipeline_mode<synchronous>, transform_indices = @transform_3, window_bounds = array<i64: 512, 256>}, {pipeline_mode = #tpu.pipeline_mode<synchronous>, transform_indices = @transform_4, window_bounds = array<i64: 1, 256>}, {pipeline_mode = #tpu.pipeline_mode<synchronous>, transform_indices = @transform_5, window_bounds = array<i64: 1, 256>}, {pipeline_mode = #tpu.pipeline_mode<synchronous>, transform_indices = @transform_6, window_bounds = array<i64: 1, 1>}, {transform_indices = @transform_7, window_bounds = array<i64: 1, 256>}]} {
    %c0 = arith.constant 0 : index
    %c0_0 = arith.constant 0 : index
    %0 = vector.load %arg1[%c0, %c0_0] : memref<256x204xf32, #tpu.memory_space<vmem>>, vector<256x204xf32>
    %1 = arith.truncf %0 : vector<256x204xf32> to vector<256x204xbf16>
    %c0_1 = arith.constant 0 : index
    %c0_2 = arith.constant 0 : index
    %2 = vector.load %arg2[%c0_1, %c0_2] : memref<204x512xbf16, #tpu.memory_space<vmem>>, vector<204x512xbf16>
    %cst = arith.constant dense<0.000000e+00> : vector<256x512xf32>
    %3 = tpu.matmul %1, %2, %cst {dimension_numbers = #tpu.dot_dimension_numbers<[1], [0], [0], [1], [0, 0, 1, 1], [], []>} : vector<256x204xbf16>, vector<204x512xbf16>, vector<256x512xf32> -> vector<256x512xf32>
    %c0_3 = arith.constant 0 : index
    %c0_4 = arith.constant 0 : index
    %4 = vector.load %arg3[%c0_3, %c0_4] : memref<1x512xf32, #tpu.memory_space<vmem>>, vector<1x512xf32>
    %5 = vector.broadcast %4 : vector<1x512xf32> to vector<256x512xf32>
    %6 = arith.addf %3, %5 : vector<256x512xf32>
    %cst_5 = arith.constant 0.000000e+00 : f32
    %7 = vector.broadcast %cst_5 : f32 to vector<256x512xf32>
    %8 = arith.cmpf oge, %6, %7 : vector<256x512xf32>
    %cst_6 = arith.constant 2.000000e-02 : f32
    %9 = vector.broadcast %cst_6 : f32 to vector<256x512xf32>
    %10 = arith.mulf %9, %6 : vector<256x512xf32>
    %11 = arith.select %8, %6, %10 : vector<256x512xi1>, vector<256x512xf32>
    %12 = arith.truncf %11 : vector<256x512xf32> to vector<256x512xbf16>
    %c0_7 = arith.constant 0 : index
    %c0_8 = arith.constant 0 : index
    %13 = vector.load %arg4[%c0_7, %c0_8] : memref<512x256xbf16, #tpu.memory_space<vmem>>, vector<512x256xbf16>
    %cst_9 = arith.constant dense<0.000000e+00> : vector<256x256xf32>
    %14 = tpu.matmul %12, %13, %cst_9 {dimension_numbers = #tpu.dot_dimension_numbers<[1], [0], [0], [1], [0, 0, 1, 1], [], []>} : vector<256x512xbf16>, vector<512x256xbf16>, vector<256x256xf32> -> vector<256x256xf32>
    %c0_10 = arith.constant 0 : index
    %c0_11 = arith.constant 0 : index
    %15 = vector.load %arg5[%c0_10, %c0_11] : memref<1x256xf32, #tpu.memory_space<vmem>>, vector<1x256xf32>
    %16 = vector.broadcast %15 : vector<1x256xf32> to vector<256x256xf32>
    %17 = arith.addf %14, %16 : vector<256x256xf32>
    %cst_12 = arith.constant 0.000000e+00 : f32
    %18 = vector.broadcast %cst_12 : f32 to vector<256x256xf32>
    %19 = arith.cmpf oge, %17, %18 : vector<256x256xf32>
    %cst_13 = arith.constant 2.000000e-02 : f32
    %20 = vector.broadcast %cst_13 : f32 to vector<256x256xf32>
    %21 = arith.mulf %20, %17 : vector<256x256xf32>
    %22 = arith.select %19, %17, %21 : vector<256x256xi1>, vector<256x256xf32>
    %23 = arith.truncf %22 : vector<256x256xf32> to vector<256x256xbf16>
    %c0_14 = arith.constant 0 : index
    %c0_15 = arith.constant 0 : index
    %24 = vector.load %arg6[%c0_14, %c0_15] : memref<1x256xbf16, #tpu.memory_space<vmem>>, vector<1x256xbf16>
    %cst_16 = arith.constant dense<0.000000e+00> : vector<1x256xf32>
    %25 = tpu.matmul %24, %23, %cst_16 {dimension_numbers = #tpu.dot_dimension_numbers<[1], [1], [0], [0], [0, 0, 1, 0], [], []>} : vector<1x256xbf16>, vector<256x256xbf16>, vector<1x256xf32> -> vector<1x256xf32>
    %c0_17 = arith.constant 0 : index
    %c0_18 = arith.constant 0 : index
    %26 = vector.load %arg7[%c0_17, %c0_18] : memref<1x1xf32, #tpu.memory_space<vmem>>, vector<1x1xf32>
    %27 = vector.broadcast %26 : vector<1x1xf32> to vector<1x256xf32>
    %28 = arith.addf %25, %27 : vector<1x256xf32>
    %c0_19 = arith.constant 0 : index
    %c0_20 = arith.constant 0 : index
    %29 = vector.load %arg8[%c0_19, %c0_20] : memref<1x256xf32, #tpu.memory_space<vmem>>, vector<1x256xf32>
    tpu.vector_store %arg8[%c0_19, %c0_20], %28 {strides = array<i32>} : memref<1x256xf32, #tpu.memory_space<vmem>>, vector<1x256xf32>,
    return
  }
  func.func @transform_0(%arg0: i32) -> (i32, i32) {
    %c0_i32 = arith.constant 0 : i32
    %c0_i32_0 = arith.constant 0 : i32
    return %arg0, %c0_i32 : i32, i32
  }
  func.func @transform_1(%arg0: i32) -> (i32, i32) {
    %c0_i32 = arith.constant 0 : i32
    %c0_i32_0 = arith.constant 0 : i32
    %c0_i32_1 = arith.constant 0 : i32
    return %c0_i32, %c0_i32_0 : i32, i32
  }
  func.func @transform_2(%arg0: i32) -> (i32, i32) {
    %c0_i32 = arith.constant 0 : i32
    %c0_i32_0 = arith.constant 0 : i32
    %c0_i32_1 = arith.constant 0 : i32
    return %c0_i32, %c0_i32_0 : i32, i32
  }
  func.func @transform_3(%arg0: i32) -> (i32, i32) {
    %c0_i32 = arith.constant 0 : i32
    %c0_i32_0 = arith.constant 0 : i32
    %c0_i32_1 = arith.constant 0 : i32
    return %c0_i32, %c0_i32_0 : i32, i32
  }
  func.func @transform_4(%arg0: i32) -> (i32, i32) {
    %c0_i32 = arith.constant 0 : i32
    %c0_i32_0 = arith.constant 0 : i32
    %c0_i32_1 = arith.constant 0 : i32
    return %c0_i32, %c0_i32_0 : i32, i32
  }
  func.func @transform_5(%arg0: i32) -> (i32, i32) {
    %c0_i32 = arith.constant 0 : i32
    %c0_i32_0 = arith.constant 0 : i32
    %c0_i32_1 = arith.constant 0 : i32
    return %c0_i32, %c0_i32_0 : i32, i32
  }
  func.func @transform_6(%arg0: i32) -> (i32, i32) {
    %c0_i32 = arith.constant 0 : i32
    %c0_i32_0 = arith.constant 0 : i32
    %c0_i32_1 = arith.constant 0 : i32
    return %c0_i32, %c0_i32_0 : i32, i32
  }
  func.func @transform_7(%arg0: i32) -> (i32, i32) {
    %c0_i32 = arith.constant 0 : i32
    %c0_i32_0 = arith.constant 0 : i32
    return %c0_i32, %arg0 : i32, i32
  }
}

</mosaic_0001>

<llo_original>
// kernel: tpu_custom_call.1
$region0: #{tpu_custom_call.1}
  #allocation0 [shape = 'u32[]', space=smem, size = 0x4, offset = 0x4, fixed_abs, tag = 'smem constant byte address 0x4 - core index']
  #allocation1 [shape = 'u32[144,128]{1,0:T(1,128)}', space=vmem, size = 0x12000, scoped, tag = 'internal scratch']
  #allocation2 [shape = 'f32[1,1]{1,0:T(1,128)S(1)}', space=vmem, size = 0x200, scoped, tag = 'scoped memory for tpu_custom_call.1']
  %s0 = inlined_call_operand.vmem [shape: f32[256,204], index: 0, kind: input, shape index: {}]
  %s1 = inlined_call_operand.vmem [shape: bf16[204,512], index: 1, kind: input, shape index: {}]
  %s2 = inlined_call_operand.vmem [shape: f32[1,512], index: 2, kind: input, shape index: {}]
  %s3 = inlined_call_operand.vmem [shape: bf16[512,256], index: 3, kind: input, shape index: {}]
  %s4 = inlined_call_operand.vmem [shape: f32[1,256], index: 4, kind: input, shape index: {}]
  %s5 = inlined_call_operand.vmem [shape: bf16[1,256], index: 5, kind: input, shape index: {}]
  %s6 = inlined_call_operand.<no memory space> [shape: f32[1,1], index: 6, kind: input, shape index: {}]
  %s7 = inlined_call_operand.hbm [shape: f32[1,256], index: 7, kind: output, shape index: {}]
  %s8 = sld [smem:[#allocation0]]
  $region38: #{tpu_custom_call.1} parent=0
    _
  %s10 = ssub.s32 1, %s8
  %s11 = scalar_select 0, %s10, %s8
  %v12 = vstv %s6
  %13 = vst [vmem:[#allocation2] sm:$0x1] %v12
  $region1: #{tpu_custom_call.1} parent=0
    #allocation3 [shape = 'u8[1024]{0}', space=vmem, size = 0x400, scoped, tag = 'output window, operand 0, single buffered']
    #allocation4 [shape = 's32[1]{0}', space=sflag, size = 0x4, scoped, tag = 'scoped memory for tpu_custom_call.1']
    %14 = vsyncpa [#allocation4], 0
    // Predicated region
    $region2: #{tpu_custom_call.1} parent=1 // pred_check
      _
    $region3: #{tpu_custom_call.1} parent=1 // pred_check_branch
      %16 = sbr.rel (0) target = $region5
    $region4: #{tpu_custom_call.1} parent=1 // pred_region
      _
    $region5: #{tpu_custom_call.1} parent=1 // pred_fallthru
      _
    // Predicated region
    $region6: #{tpu_custom_call.1} parent=1 // pred_check
      _
    $region7: #{tpu_custom_call.1} parent=1 // pred_check_branch
      %18 = sbr.rel (0) target = $region9
    $region8: #{tpu_custom_call.1} parent=1 // pred_region
      _
    $region9: #{tpu_custom_call.1} parent=1 // pred_fallthru
      _
    // Predicated region
    $region10: #{tpu_custom_call.1} parent=1 // pred_check
      _
    $region11: #{tpu_custom_call.1} parent=1 // pred_check_branch
      %20 = sbr.rel (0) target = $region13
    $region12: #{tpu_custom_call.1} parent=1 // pred_region
      _
    $region13: #{tpu_custom_call.1} parent=1 // pred_fallthru
      _
    // Predicated region
    $region14: #{tpu_custom_call.1} parent=1 // pred_check
      _
    $region15: #{tpu_custom_call.1} parent=1 // pred_check_branch
      %22 = sbr.rel (0) target = $region17
    $region16: #{tpu_custom_call.1} parent=1 // pred_region
      _
    $region17: #{tpu_custom_call.1} parent=1 // pred_fallthru
      _
    // Predicated region
    $region18: #{tpu_custom_call.1} parent=1 // pred_check
      _
    $region19: #{tpu_custom_call.1} parent=1 // pred_check_branch
      %24 = sbr.rel (0) target = $region21
    $region20: #{tpu_custom_call.1} parent=1 // pred_region
      _
    $region21: #{tpu_custom_call.1} parent=1 // pred_fallthru
      _
    // Predicated region
    $region22: #{tpu_custom_call.1} parent=1 // pred_check
      _
    $region23: #{tpu_custom_call.1} parent=1 // pred_check_branch
      %26 = sbr.rel (0) target = $region25
    $region24: #{tpu_custom_call.1} parent=1 // pred_region
      _
    $region25: #{tpu_custom_call.1} parent=1 // pred_fallthru
      _
    // Predicated region
    $region26: #{tpu_custom_call.1} parent=1 // pred_check
      _
    $region27: #{tpu_custom_call.1} parent=1 // pred_check_branch
      %28 = sbr.rel (0) target = $region29
    $region28: #{tpu_custom_call.1} parent=1 // pred_region
      _
    $region29: #{tpu_custom_call.1} parent=1 // pred_fallthru
      _
    %v30 = vld [vmem:[%s0] sm:$0xff]
    %v31 = vld [vmem:[%s0 + $0x8] sm:$0xff]
    %v32 = vld [vmem:[%s0 + $0x10] sm:$0xff]
    %v33 = vld [vmem:[%s0 + $0x18] sm:$0xff]
    %v34 = vld [vmem:[%s0 + $0x20] sm:$0xff]
    %v35 = vld [vmem:[%s0 + $0x28] sm:$0xff]
    %v36 = vld [vmem:[%s0 + $0x30] sm:$0xff]
    %v37 = vld [vmem:[%s0 + $0x38] sm:$0xff]
    %v38 = vld [vmem:[%s0 + $0x40] sm:$0xff]
    %v39 = vld [vmem:[%s0 + $0x48] sm:$0xff]
    %v40 = vld [vmem:[%s0 + $0x50] sm:$0xff]
    %v41 = vld [vmem:[%s0 + $0x58] sm:$0xff]
    %v42 = vld [vmem:[%s0 + $0x60] sm:$0xff]
    %v43 = vld [vmem:[%s0 + $0x68] sm:$0xff]
    %v44 = vld [vmem:[%s0 + $0x70] sm:$0xff]
    %v45 = vld [vmem:[%s0 + $0x78] sm:$0xff]
    %v46 = vld [vmem:[%s0 + $0x80] sm:$0xff]
    %v47 = vld [vmem:[%s0 + $0x88] sm:$0xff]
    %v48 = vld [vmem:[%s0 + $0x90] sm:$0xff]
    %v49 = vld [vmem:[%s0 + $0x98] sm:$0xff]
    %v50 = vld [vmem:[%s0 + $0xa0] sm:$0xff]
    %v51 = vld [vmem:[%s0 + $0xa8] sm:$0xff]
    %v52 = vld [vmem:[%s0 + $0xb0] sm:$0xff]
    %v53 = vld [vmem:[%s0 + $0xb8] sm:$0xff]
    %v54 = vld [vmem:[%s0 + $0xc0] sm:$0xff]
    %v55 = vld [vmem:[%s0 + $0xc8] sm:$0xff]
    %v56 = vld [vmem:[%s0 + $0xd0] sm:$0xff]
    %v57 = vld [vmem:[%s0 + $0xd8] sm:$0xff]
    %v58 = vld [vmem:[%s0 + $0xe0] sm:$0xff]
    %v59 = vld [vmem:[%s0 + $0xe8] sm:$0xff]
    %v60 = vld [vmem:[%s0 + $0xf0] sm:$0xff]
    %v61 = vld [vmem:[%s0 + $0xf8] sm:$0xff]
    %v62 = vld [vmem:[%s0 + $0x100] sm:$0xff]
    %v63 = vld [vmem:[%s0 + $0x108] sm:$0xff]
    %v64 = vld [vmem:[%s0 + $0x110] sm:$0xff]
    %v65 = vld [vmem:[%s0 + $0x118] sm:$0xff]
    %v66 = vld [vmem:[%s0 + $0x120] sm:$0xff]
    %v67 = vld [vmem:[%s0 + $0x128] sm:$0xff]
    %v68 = vld [vmem:[%s0 + $0x130] sm:$0xff]
    %v69 = vld [vmem:[%s0 + $0x138] sm:$0xff]
    %v70 = vld [vmem:[%s0 + $0x140] sm:$0xff]
    %v71 = vld [vmem:[%s0 + $0x148] sm:$0xff]
    %v72 = vld [vmem:[%s0 + $0x150] sm:$0xff]
    %v73 = vld [vmem:[%s0 + $0x158] sm:$0xff]
    %v74 = vld [vmem:[%s0 + $0x160] sm:$0xff]
    %v75 = vld [vmem:[%s0 + $0x168] sm:$0xff]
    %v76 = vld [vmem:[%s0 + $0x170] sm:$0xff]
    %v77 = vld [vmem:[%s0 + $0x178] sm:$0xff]
    %v78 = vld [vmem:[%s0 + $0x180] sm:$0xff]
    %v79 = vld [vmem:[%s0 + $0x188] sm:$0xff]
    %v80 = vld [vmem:[%s0 + $0x190] sm:$0xff]
    %v81 = vld [vmem:[%s0 + $0x198] sm:$0xff]
    %v82 = vld [vmem:[%s0 + $0x1a0] sm:$0xff]
    %v83 = vld [vmem:[%s0 + $0x1a8] sm:$0xff]
    %v84 = vld [vmem:[%s0 + $0x1b0] sm:$0xff]
    %v85 = vld [vmem:[%s0 + $0x1b8] sm:$0xff]
    %v86 = vld [vmem:[%s0 + $0x1c0] sm:$0xff]
    %v87 = vld [vmem:[%s0 + $0x1c8] sm:$0xff]
    %v88 = vld [vmem:[%s0 + $0x1d0] sm:$0xff]
    %v89 = vld [vmem:[%s0 + $0x1d8] sm:$0xff]
    %v90 = vld [vmem:[%s0 + $0x1e0] sm:$0xff]
    %v91 = vld [vmem:[%s0 + $0x1e8] sm:$0xff]
    %v92 = vld [vmem:[%s0 + $0x1f0] sm:$0xff]
    %v93 = vld [vmem:[%s0 + $0x1f8] sm:$0xff]
    %v94 = vpack.c.bf16 %v32, %v30
    %v95 = vpack.c.bf16 %v33, %v31
    %v96 = vpack.c.bf16 %v36, %v34
    %v97 = vpack.c.bf16 %v37, %v35
    %v98 = vpack.c.bf16 %v40, %v38
    %v99 = vpack.c.bf16 %v41, %v39
    %v100 = vpack.c.bf16 %v44, %v42
    %v101 = vpack.c.bf16 %v45, %v43
    %v102 = vpack.c.bf16 %v48, %v46
    %v103 = vpack.c.bf16 %v49, %v47
    %v104 = vpack.c.bf16 %v52, %v50
    %v105 = vpack.c.bf16 %v53, %v51
    %v106 = vpack.c.bf16 %v56, %v54
    %v107 = vpack.c.bf16 %v57, %v55
    %v108 = vpack.c.bf16 %v60, %v58
    %v109 = vpack.c.bf16 %v61, %v59
    %v110 = vpack.c.bf16 %v64, %v62
    %v111 = vpack.c.bf16 %v65, %v63
    %v112 = vpack.c.bf16 %v68, %v66
    %v113 = vpack.c.bf16 %v69, %v67
    %v114 = vpack.c.bf16 %v72, %v70
    %v115 = vpack.c.bf16 %v73, %v71
    %v116 = vpack.c.bf16 %v76, %v74
    %v117 = vpack.c.bf16 %v77, %v75
    %v118 = vpack.c.bf16 %v80, %v78
    %v119 = vpack.c.bf16 %v81, %v79
    %v120 = vpack.c.bf16 %v84, %v82
    %v121 = vpack.c.bf16 %v85, %v83
    %v122 = vpack.c.bf16 %v88, %v86
    %v123 = vpack.c.bf16 %v89, %v87
    %v124 = vpack.c.bf16 %v92, %v90
    %v125 = vpack.c.bf16 %v93, %v91
    %v126 = vld [vmem:[%s1] sm:$0xff]
    %v127 = vld [vmem:[%s1 + $0x8] sm:$0xff]
    %v128 = vld [vmem:[%s1 + $0x10] sm:$0xff]
    %v129 = vld [vmem:[%s1 + $0x18] sm:$0xff]
    %v130 = vld [vmem:[%s1 + $0x20] sm:$0xff]
    %v131 = vld [vmem:[%s1 + $0x28] sm:$0xff]
    %v132 = vld [vmem:[%s1 + $0x30] sm:$0xff]
    %v133 = vld [vmem:[%s1 + $0x38] sm:$0xff]
    %v134 = vld [vmem:[%s1 + $0x40] sm:$0xff]
    %v135 = vld [vmem:[%s1 + $0x48] sm:$0xff]
    %v136 = vld [vmem:[%s1 + $0x50] sm:$0xff]
    %v137 = vld [vmem:[%s1 + $0x58] sm:$0xff]
    %v138 = vld [vmem:[%s1 + $0x60] sm:$0xff]
    %v139 = vld [vmem:[%s1 + $0x68] sm:$0xff]
    %v140 = vld [vmem:[%s1 + $0x70] sm:$0xff]
    %v141 = vld [vmem:[%s1 + $0x78] sm:$0xff]
    %v142 = vld [vmem:[%s1 + $0x80] sm:$0xff]
    %v143 = vld [vmem:[%s1 + $0x88] sm:$0xff]
    %v144 = vld [vmem:[%s1 + $0x90] sm:$0xff]
    %v145 = vld [vmem:[%s1 + $0x98] sm:$0xff]
    %v146 = vld [vmem:[%s1 + $0xa0] sm:$0xff]
    %v147 = vld [vmem:[%s1 + $0xa8] sm:$0xff]
    %v148 = vld [vmem:[%s1 + $0xb0] sm:$0xff]
    %v149 = vld [vmem:[%s1 + $0xb8] sm:$0xff]
    %v150 = vld [vmem:[%s1 + $0xc0] sm:$0xff]
    %v151 = vld [vmem:[%s1 + $0xc8] sm:$0xff]
    %v152 = vld [vmem:[%s1 + $0xd0] sm:$0xff]
    %v153 = vld [vmem:[%s1 + $0xd8] sm:$0xff]
    %v154 = vld [vmem:[%s1 + $0xe0] sm:$0xff]
    %v155 = vld [vmem:[%s1 + $0xe8] sm:$0xff]
    %v156 = vld [vmem:[%s1 + $0xf0] sm:$0xff]
    %v157 = vld [vmem:[%s1 + $0xf8] sm:$0xff]
    %v158 = vld [vmem:[%s1 + $0x100] sm:$0xff]
    %v159 = vld [vmem:[%s1 + $0x108] sm:$0xff]
    %v160 = vld [vmem:[%s1 + $0x110] sm:$0xff]
    %v161 = vld [vmem:[%s1 + $0x118] sm:$0xff]
    %v162 = vld [vmem:[%s1 + $0x120] sm:$0xff]
    %v163 = vld [vmem:[%s1 + $0x128] sm:$0xff]
    %v164 = vld [vmem:[%s1 + $0x130] sm:$0xff]
    %v165 = vld [vmem:[%s1 + $0x138] sm:$0xff]
    %v166 = vld [vmem:[%s1 + $0x140] sm:$0xff]
    %v167 = vld [vmem:[%s1 + $0x148] sm:$0xff]
    %v168 = vld [vmem:[%s1 + $0x150] sm:$0xff]
    %v169 = vld [vmem:[%s1 + $0x158] sm:$0xff]
    %v170 = vld [vmem:[%s1 + $0x160] sm:$0xff]
    %v171 = vld [vmem:[%s1 + $0x168] sm:$0xff]
    %v172 = vld [vmem:[%s1 + $0x170] sm:$0xff]
    %v173 = vld [vmem:[%s1 + $0x178] sm:$0xff]
    %v174 = vld [vmem:[%s1 + $0x180] sm:$0xff]
    %v175 = vld [vmem:[%s1 + $0x188] sm:$0xff]
    %v176 = vld [vmem:[%s1 + $0x190] sm:$0x33]
    %v177 = vld [vmem:[%s1 + $0x198] sm:$0x33]
    %v178 = vld [vmem:[%s2] sm:$0xf]
    %v180 = vlaneseq
    %v181 = vshrl.u32 %v180, 7
    %v182 = vsub.s32 0, %v181
    %v183 = vrot.slane %v178, %v182
    %v184 = vlaneseq
    %v185 = vshrl.u32 %v184, 7
    %v186 = vsub.s32 1, %v185
    %v187 = vrot.slane %v178, %v186
    %v188 = vlaneseq
    %v189 = vshrl.u32 %v188, 7
    %v190 = vsub.s32 2, %v189
    %v191 = vrot.slane %v178, %v190
    %v192 = vlaneseq
    %v193 = vshrl.u32 %v192, 7
    %v194 = vsub.s32 3, %v193
    %v195 = vrot.slane %v178, %v194
    %v252 = vunpack.c.l.b16 %v126
    %v253 = vunpack.c.h.b16 %v126
    %v254 = vunpack.c.l.b16 %v127
    %v255 = vunpack.c.h.b16 %v127
    %v256 = vunpack.c.l.b16 %v128
    %v257 = vunpack.c.h.b16 %v128
    %v258 = vunpack.c.l.b16 %v129
    %v259 = vunpack.c.h.b16 %v129
    %v260 = vunpack.c.l.b16 %v130
    %v261 = vunpack.c.h.b16 %v130
    %v262 = vunpack.c.l.b16 %v131
    %v263 = vunpack.c.h.b16 %v131
    %v264 = vunpack.c.l.b16 %v132
    %v265 = vunpack.c.h.b16 %v132
    %v266 = vunpack.c.l.b16 %v133
    %v267 = vunpack.c.h.b16 %v133
    %v268 = vunpack.c.l.b16 %v134
    %v269 = vunpack.c.h.b16 %v134
    %v270 = vunpack.c.l.b16 %v135
    %v271 = vunpack.c.h.b16 %v135
    %v272 = vunpack.c.l.b16 %v136
    %v273 = vunpack.c.h.b16 %v136
    %v274 = vunpack.c.l.b16 %v137
    %v275 = vunpack.c.h.b16 %v137
    %v276 = vunpack.c.l.b16 %v138
    %v277 = vunpack.c.h.b16 %v138
    %v278 = vunpack.c.l.b16 %v139
    %v279 = vunpack.c.h.b16 %v139
    %v280 = vunpack.c.l.b16 %v140
    %v281 = vunpack.c.h.b16 %v140
    %v282 = vunpack.c.l.b16 %v141
    %v283 = vunpack.c.h.b16 %v141
    %v284 = vunpack.c.l.b16 %v142
    %v285 = vunpack.c.h.b16 %v142
    %v286 = vunpack.c.l.b16 %v143
    %v287 = vunpack.c.h.b16 %v143
    %v288 = vunpack.c.l.b16 %v144
    %v289 = vunpack.c.h.b16 %v144
    %v290 = vunpack.c.l.b16 %v145
    %v291 = vunpack.c.h.b16 %v145
    %v292 = vunpack.c.l.b16 %v146
    %v293 = vunpack.c.h.b16 %v146
    %v294 = vunpack.c.l.b16 %v147
    %v295 = vunpack.c.h.b16 %v147
    %v296 = vunpack.c.l.b16 %v148
    %v297 = vunpack.c.h.b16 %v148
    %v298 = vunpack.c.l.b16 %v149
    %v299 = vunpack.c.h.b16 %v149
    %v300 = vunpack.c.l.b16 %v150
    %v301 = vunpack.c.h.b16 %v150
    %v302 = vunpack.c.l.b16 %v151
    %v303 = vunpack.c.h.b16 %v151
    %v304 = vunpack.c.l.b16 %v152
    %v305 = vunpack.c.h.b16 %v152
    %v306 = vunpack.c.l.b16 %v153
    %v307 = vunpack.c.h.b16 %v153
    %v308 = vunpack.c.l.b16 %v154
    %v309 = vunpack.c.h.b16 %v154
    %v310 = vunpack.c.l.b16 %v155
    %v311 = vunpack.c.h.b16 %v155
    %v312 = vunpack.c.l.b16 %v156
    %v313 = vunpack.c.h.b16 %v156
    %v314 = vunpack.c.l.b16 %v157
    %v315 = vunpack.c.h.b16 %v157
    %v316 = vunpack.c.l.b16 %v158
    %v317 = vunpack.c.h.b16 %v158
    %v318 = vunpack.c.l.b16 %v159
    %v319 = vunpack.c.h.b16 %v159
    %v320 = vunpack.c.l.b16 %v160
    %v321 = vunpack.c.h.b16 %v160
    %v322 = vunpack.c.l.b16 %v161
    %v323 = vunpack.c.h.b16 %v161
    %v324 = vunpack.c.l.b16 %v162
    %v325 = vunpack.c.h.b16 %v162
    %v326 = vunpack.c.l.b16 %v163
    %v327 = vunpack.c.h.b16 %v163
    %v328 = vunpack.c.l.b16 %v164
    %v329 = vunpack.c.h.b16 %v164
    %v330 = vunpack.c.l.b16 %v165
    %v331 = vunpack.c.h.b16 %v165
    %v332 = vunpack.c.l.b16 %v166
    %v333 = vunpack.c.h.b16 %v166
    %v334 = vunpack.c.l.b16 %v167
    %v335 = vunpack.c.h.b16 %v167
    %v336 = vunpack.c.l.b16 %v168
    %v337 = vunpack.c.h.b16 %v168
    %v338 = vunpack.c.l.b16 %v169
    %v339 = vunpack.c.h.b16 %v169
    %v340 = vunpack.c.l.b16 %v170
    %v341 = vunpack.c.h.b16 %v170
    %v342 = vunpack.c.l.b16 %v171
    %v343 = vunpack.c.h.b16 %v171
    %v344 = vunpack.c.l.b16 %v172
    %v345 = vunpack.c.h.b16 %v172
    %v346 = vunpack.c.l.b16 %v173
    %v347 = vunpack.c.h.b16 %v173
    %v348 = vunpack.c.l.b16 %v174
    %v349 = vunpack.c.h.b16 %v174
    %v350 = vunpack.c.l.b16 %v175
    %v351 = vunpack.c.h.b16 %v175
    %v352 = vunpack.c.l.b16 %v176
    %v353 = vunpack.c.h.b16 %v176
    %v354 = vunpack.c.l.b16 %v177
    %v355 = vunpack.c.h.b16 %v177
    %v356 = vpack.c.b16 %v256, %v252
    %v357 = vpack.c.b16 %v257, %v253
    %v358 = vpack.c.b16 %v258, %v254
    %v359 = vpack.c.b16 %v259, %v255
    %v360 = vpack.c.b16 %v264, %v260
    %v361 = vpack.c.b16 %v265, %v261
    %v362 = vpack.c.b16 %v266, %v262
    %v363 = vpack.c.b16 %v267, %v263
    %v364 = vpack.c.b16 %v272, %v268
    %v365 = vpack.c.b16 %v273, %v269
    %v366 = vpack.c.b16 %v274, %v270
    %v367 = vpack.c.b16 %v275, %v271
    %v368 = vpack.c.b16 %v280, %v276
    %v369 = vpack.c.b16 %v281, %v277
    %v370 = vpack.c.b16 %v282, %v278
    %v371 = vpack.c.b16 %v283, %v279
    %v372 = vpack.c.b16 %v288, %v284
    %v373 = vpack.c.b16 %v289, %v285
    %v374 = vpack.c.b16 %v290, %v286
    %v375 = vpack.c.b16 %v291, %v287
    %v376 = vpack.c.b16 %v296, %v292
    %v377 = vpack.c.b16 %v297, %v293
    %v378 = vpack.c.b16 %v298, %v294
    %v379 = vpack.c.b16 %v299, %v295
    %v380 = vpack.c.b16 %v304, %v300
    %v381 = vpack.c.b16 %v305, %v301
    %v382 = vpack.c.b16 %v306, %v302
    %v383 = vpack.c.b16 %v307, %v303
    %v384 = vpack.c.b16 %v312, %v308
    %v385 = vpack.c.b16 %v313, %v309
    %v386 = vpack.c.b16 %v314, %v310
    %v387 = vpack.c.b16 %v315, %v311
    %v388 = vpack.c.b16 %v320, %v316
    %v389 = vpack.c.b16 %v321, %v317
    %v390 = vpack.c.b16 %v322, %v318
    %v391 = vpack.c.b16 %v323, %v319
    %v392 = vpack.c.b16 %v328, %v324
    %v393 = vpack.c.b16 %v329, %v325
    %v394 = vpack.c.b16 %v330, %v326
    %v395 = vpack.c.b16 %v331, %v327
    %v396 = vpack.c.b16 %v336, %v332
    %v397 = vpack.c.b16 %v337, %v333
    %v398 = vpack.c.b16 %v338, %v334
    %v399 = vpack.c.b16 %v339, %v335
    %v400 = vpack.c.b16 %v344, %v340
    %v401 = vpack.c.b16 %v345, %v341
    %v402 = vpack.c.b16 %v346, %v342
    %v403 = vpack.c.b16 %v347, %v343
    %v404 = vpack.c.b16 %v352, %v348
    %v405 = vpack.c.b16 %v353, %v349
    %v406 = vpack.c.b16 %v354, %v350
    %v407 = vpack.c.b16 %v355, %v351
    %vm456 = vcmask 621568
    %v458 = vsel %vm456, %v95, 0
    %v461 = vsel %vm456, %v97, 0
    %v464 = vsel %vm456, %v99, 0
    %v467 = vsel %vm456, %v101, 0
    %v470 = vsel %vm456, %v103, 0
    %v473 = vsel %vm456, %v105, 0
    %v476 = vsel %vm456, %v107, 0
    %v479 = vsel %vm456, %v109, 0
    %v482 = vsel %vm456, %v111, 0
    %v485 = vsel %vm456, %v113, 0
    %v488 = vsel %vm456, %v115, 0
    %v491 = vsel %vm456, %v117, 0
    %v494 = vsel %vm456, %v119, 0
    %v497 = vsel %vm456, %v121, 0
    %v500 = vsel %vm456, %v123, 0
    %v503 = vsel %vm456, %v125, 0
    %vm505 = vcmask 1045504
    %v507 = vsel %vm505, %v404, 0
    %v510 = vsel %vm505, %v405, 0
    %v513 = vsel %vm505, %v406, 0
    %v516 = vsel %vm505, %v407, 0
    %518 = vmatprep.subr.bf16.mxu0 %v357
    %519 = vmatpush1.bf16.msra.mxu0 %v356
    %520 = vmatprep.subr.bf16.mxu0 %v361
    %521 = vmatpush1.bf16.msra.mxu0 %v360
    %522 = vmatprep.subr.bf16.mxu0 %v365
    %523 = vmatpush1.bf16.msra.mxu0 %v364
    %524 = vmatprep.subr.bf16.mxu0 %v369
    %525 = vmatpush1.bf16.msra.mxu0 %v368
    %526 = vmatprep.subr.bf16.mxu0 %v373
    %527 = vmatpush1.bf16.msra.mxu0 %v372
    %528 = vmatprep.subr.bf16.mxu0 %v377
    %529 = vmatpush1.bf16.msra.mxu0 %v376
    %530 = vmatprep.subr.bf16.mxu0 %v381
    %531 = vmatpush1.bf16.msra.mxu0 %v380
    %532 = vmatprep.subr.bf16.mxu0 %v385
    %533 = vmatpush1.bf16.msra.mxu0 %v384
    %534 = vmatprep.subr.bf16.mxu0 %v389
    %535 = vmatpush1.bf16.msra.mxu0 %v388
    %536 = vmatprep.subr.bf16.mxu0 %v393
    %537 = vmatpush1.bf16.msra.mxu0 %v392
    %538 = vmatprep.subr.bf16.mxu0 %v397
    %539 = vmatpush1.bf16.msra.mxu0 %v396
    %540 = vmatprep.subr.bf16.mxu0 %v401
    %541 = vmatpush1.bf16.msra.mxu0 %v400
    %542 = vmatprep.subr.bf16.mxu0 %v510
    %543 = vmatpush1.bf16.msra.mxu0 %v507
    %544 = vmatprep.subr.bf16.mxu0 0
    %545 = vmatpush1.bf16.msra.mxu0 0
    %546 = vmatprep.subr.bf16.mxu0 0
    %547 = vmatpush1.bf16.msra.mxu0 0
    %548 = vmatprep.subr.bf16.mxu0 0
    %549 = vmatpush1.bf16.msra.mxu0 0
    %550 = vmatprep.mubr.bf16.mxu0 %v458
    %551 = vmatmul.mubr.bf16.gmra.mrb[0].mxu0 %v94
    %v552 = vpop.f32.mrb[0].mxu0
    %v553 = vadd.f32 %v183, %v552
    %v554 = vpop.f32.mrb[0].mxu0
    %v555 = vadd.f32 %v187, %v554
    %v556 = vpop.f32.mrb[0].mxu0
    %v557 = vadd.f32 %v183, %v556
    %v558 = vpop.f32.mrb[0].mxu0
    %v559 = vadd.f32 %v187, %v558
    %560 = vmatprep.mubr.bf16.mxu0 %v461
    %561 = vmatmul.mubr.bf16.gmra.mrb[0].mxu0 %v96
    %v562 = vpop.f32.mrb[0].mxu0
    %v563 = vadd.f32 %v183, %v562
    %v564 = vpop.f32.mrb[0].mxu0
    %v565 = vadd.f32 %v187, %v564
    %v566 = vpop.f32.mrb[0].mxu0
    %v567 = vadd.f32 %v183, %v566
    %v568 = vpop.f32.mrb[0].mxu0
    %v569 = vadd.f32 %v187, %v568
    %570 = vmatprep.mubr.bf16.mxu0 %v464
    %571 = vmatmul.mubr.bf16.gmra.mrb[0].mxu0 %v98
    %v572 = vpop.f32.mrb[0].mxu0
    %v573 = vadd.f32 %v183, %v572
    %v574 = vpop.f32.mrb[0].mxu0
    %v575 = vadd.f32 %v187, %v574
    %v576 = vpop.f32.mrb[0].mxu0
    %v577 = vadd.f32 %v183, %v576
    %v578 = vpop.f32.mrb[0].mxu0
    %v579 = vadd.f32 %v187, %v578
    %580 = vmatprep.mubr.bf16.mxu0 %v467
    %581 = vmatmul.mubr.bf16.gmra.mrb[0].mxu0 %v100
    %v582 = vpop.f32.mrb[0].mxu0
    %v583 = vadd.f32 %v183, %v582
    %v584 = vpop.f32.mrb[0].mxu0
    %v585 = vadd.f32 %v187, %v584
    %v586 = vpop.f32.mrb[0].mxu0
    %v587 = vadd.f32 %v183, %v586
    %v588 = vpop.f32.mrb[0].mxu0
    %v589 = vadd.f32 %v187, %v588
    %590 = vmatprep.mubr.bf16.mxu0 %v470
    %591 = vmatmul.mubr.bf16.gmra.mrb[0].mxu0 %v102
    %v592 = vpop.f32.mrb[0].mxu0
    %v593 = vadd.f32 %v183, %v592
    %v594 = vpop.f32.mrb[0].mxu0
    %v595 = vadd.f32 %v187, %v594
    %v596 = vpop.f32.mrb[0].mxu0
    %v597 = vadd.f32 %v183, %v596
    %v598 = vpop.f32.mrb[0].mxu0
    %v599 = vadd.f32 %v187, %v598
    %600 = vmatprep.mubr.bf16.mxu0 %v473
    %601 = vmatmul.mubr.bf16.gmra.mrb[0].mxu0 %v104
    %v602 = vpop.f32.mrb[0].mxu0
    %v603 = vadd.f32 %v183, %v602
    %v604 = vpop.f32.mrb[0].mxu0
    %v605 = vadd.f32 %v187, %v604
    %v606 = vpop.f32.mrb[0].mxu0
    %v607 = vadd.f32 %v183, %v606
    %v608 = vpop.f32.mrb[0].mxu0
    %v609 = vadd.f32 %v187, %v608
    %610 = vmatprep.mubr.bf16.mxu0 %v476
    %611 = vmatmul.mubr.bf16.gmra.mrb[0].mxu0 %v106
    %v612 = vpop.f32.mrb[0].mxu0
    %v613 = vadd.f32 %v183, %v612
    %v614 = vpop.f32.mrb[0].mxu0
    %v615 = vadd.f32 %v187, %v614
    %v616 = vpop.f32.mrb[0].mxu0
    %v617 = vadd.f32 %v183, %v616
    %v618 = vpop.f32.mrb[0].mxu0
    %v619 = vadd.f32 %v187, %v618
    %620 = vmatprep.mubr.bf16.mxu0 %v479
    %621 = vmatmul.mubr.bf16.gmra.mrb[0].mxu0 %v108
    %v622 = vpop.f32.mrb[0].mxu0
    %v623 = vadd.f32 %v183, %v622
    %v624 = vpop.f32.mrb[0].mxu0
    %v625 = vadd.f32 %v187, %v624
    %v626 = vpop.f32.mrb[0].mxu0
    %v627 = vadd.f32 %v183, %v626
    %v628 = vpop.f32.mrb[0].mxu0
    %v629 = vadd.f32 %v187, %v628
    %630 = vmatprep.mubr.bf16.mxu0 %v482
    %631 = vmatmul.mubr.bf16.gmra.mrb[0].mxu0 %v110
    %v632 = vpop.f32.mrb[0].mxu0
    %v633 = vadd.f32 %v183, %v632
    %v634 = vpop.f32.mrb[0].mxu0
    %v635 = vadd.f32 %v187, %v634
    %v636 = vpop.f32.mrb[0].mxu0
    %v637 = vadd.f32 %v183, %v636
    %v638 = vpop.f32.mrb[0].mxu0
    %v639 = vadd.f32 %v187, %v638
    %640 = vmatprep.mubr.bf16.mxu0 %v485
    %641 = vmatmul.mubr.bf16.gmra.mrb[0].mxu0 %v112
    %v642 = vpop.f32.mrb[0].mxu0
    %v643 = vadd.f32 %v183, %v642
    %v644 = vpop.f32.mrb[0].mxu0
    %v645 = vadd.f32 %v187, %v644
    %v646 = vpop.f32.mrb[0].mxu0
    %v647 = vadd.f32 %v183, %v646
    %v648 = vpop.f32.mrb[0].mxu0
    %v649 = vadd.f32 %v187, %v648
    %650 = vmatprep.mubr.bf16.mxu0 %v488
    %651 = vmatmul.mubr.bf16.gmra.mrb[0].mxu0 %v114
    %v652 = vpop.f32.mrb[0].mxu0
    %v653 = vadd.f32 %v183, %v652
    %v654 = vpop.f32.mrb[0].mxu0
    %v655 = vadd.f32 %v187, %v654
    %v656 = vpop.f32.mrb[0].mxu0
    %v657 = vadd.f32 %v183, %v656
    %v658 = vpop.f32.mrb[0].mxu0
    %v659 = vadd.f32 %v187, %v658
    %660 = vmatprep.mubr.bf16.mxu0 %v491
    %661 = vmatmul.mubr.bf16.gmra.mrb[0].mxu0 %v116
    %v662 = vpop.f32.mrb[0].mxu0
    %v663 = vadd.f32 %v183, %v662
    %v664 = vpop.f32.mrb[0].mxu0
    %v665 = vadd.f32 %v187, %v664
    %v666 = vpop.f32.mrb[0].mxu0
    %v667 = vadd.f32 %v183, %v666
    %v668 = vpop.f32.mrb[0].mxu0
    %v669 = vadd.f32 %v187, %v668
    %670 = vmatprep.mubr.bf16.mxu0 %v494
    %671 = vmatmul.mubr.bf16.gmra.mrb[0].mxu0 %v118
    %v672 = vpop.f32.mrb[0].mxu0
    %v673 = vadd.f32 %v183, %v672
    %v674 = vpop.f32.mrb[0].mxu0
    %v675 = vadd.f32 %v187, %v674
    %v676 = vpop.f32.mrb[0].mxu0
    %v677 = vadd.f32 %v183, %v676
    %v678 = vpop.f32.mrb[0].mxu0
    %v679 = vadd.f32 %v187, %v678
    %680 = vmatprep.mubr.bf16.mxu0 %v497
    %681 = vmatmul.mubr.bf16.gmra.mrb[0].mxu0 %v120
    %v682 = vpop.f32.mrb[0].mxu0
    %v683 = vadd.f32 %v183, %v682
    %v684 = vpop.f32.mrb[0].mxu0
    %v685 = vadd.f32 %v187, %v684
    %v686 = vpop.f32.mrb[0].mxu0
    %v687 = vadd.f32 %v183, %v686
    %v688 = vpop.f32.mrb[0].mxu0
    %v689 = vadd.f32 %v187, %v688
    %690 = vmatprep.mubr.bf16.mxu0 %v500
    %691 = vmatmul.mubr.bf16.gmra.mrb[0].mxu0 %v122
    %v692 = vpop.f32.mrb[0].mxu0
    %v693 = vadd.f32 %v183, %v692
    %v694 = vpop.f32.mrb[0].mxu0
    %v695 = vadd.f32 %v187, %v694
    %v696 = vpop.f32.mrb[0].mxu0
    %v697 = vadd.f32 %v183, %v696
    %v698 = vpop.f32.mrb[0].mxu0
    %v699 = vadd.f32 %v187, %v698
    %700 = vmatprep.mubr.bf16.mxu0 %v503
    %701 = vmatmul.mubr.bf16.gmra.mrb[0].mxu0 %v124
    %v702 = vpop.f32.mrb[0].mxu0
    %v703 = vadd.f32 %v183, %v702
    %v704 = vpop.f32.mrb[0].mxu0
    %v705 = vadd.f32 %v187, %v704
    %v706 = vpop.f32.mrb[0].mxu0
    %v707 = vadd.f32 %v183, %v706
    %v708 = vpop.f32.mrb[0].mxu0
    %v709 = vadd.f32 %v187, %v708
    %710 = vdwg.mxu0
    %711 = vmatprep.subr.bf16.mxu0 %v359
    %712 = vmatpush1.bf16.msra.mxu0 %v358
    %713 = vmatprep.subr.bf16.mxu0 %v363
    %714 = vmatpush1.bf16.msra.mxu0 %v362
    %715 = vmatprep.subr.bf16.mxu0 %v367
    %716 = vmatpush1.bf16.msra.mxu0 %v366
    %717 = vmatprep.subr.bf16.mxu0 %v371
    %718 = vmatpush1.bf16.msra.mxu0 %v370
    %719 = vmatprep.subr.bf16.mxu0 %v375
    %720 = vmatpush1.bf16.msra.mxu0 %v374
    %721 = vmatprep.subr.bf16.mxu0 %v379
    %722 = vmatpush1.bf16.msra.mxu0 %v378
    %723 = vmatprep.subr.bf16.mxu0 %v383
    %724 = vmatpush1.bf16.msra.mxu0 %v382
    %725 = vmatprep.subr.bf16.mxu0 %v387
    %726 = vmatpush1.bf16.msra.mxu0 %v386
    %727 = vmatprep.subr.bf16.mxu0 %v391
    %728 = vmatpush1.bf16.msra.mxu0 %v390
    %729 = vmatprep.subr.bf16.mxu0 %v395
    %730 = vmatpush1.bf16.msra.mxu0 %v394
    %731 = vmatprep.subr.bf16.mxu0 %v399
    %732 = vmatpush1.bf16.msra.mxu0 %v398
    %733 = vmatprep.subr.bf16.mxu0 %v403
    %734 = vmatpush1.bf16.msra.mxu0 %v402
    %735 = vmatprep.subr.bf16.mxu0 %v516
    %736 = vmatpush1.bf16.msra.mxu0 %v513
    %737 = vmatprep.subr.bf16.mxu0 0
    %738 = vmatpush1.bf16.msra.mxu0 0
    %739 = vmatprep.subr.bf16.mxu0 0
    %740 = vmatpush1.bf16.msra.mxu0 0
    %741 = vmatprep.subr.bf16.mxu0 0
    %742 = vmatpush1.bf16.msra.mxu0 0
    %743 = vmatprep.mubr.bf16.mxu0 %v458
    %744 = vmatmul.mubr.bf16.gmra.mrb[0].mxu0 %v94
    %v745 = vpop.f32.mrb[0].mxu0
    %v746 = vadd.f32 %v191, %v745
    %v747 = vpop.f32.mrb[0].mxu0
    %v748 = vadd.f32 %v195, %v747
    %v749 = vpop.f32.mrb[0].mxu0
    %v750 = vadd.f32 %v191, %v749
    %v751 = vpop.f32.mrb[0].mxu0
    %v752 = vadd.f32 %v195, %v751
    %753 = vmatprep.mubr.bf16.mxu0 %v461
    %754 = vmatmul.mubr.bf16.gmra.mrb[0].mxu0 %v96
    %v755 = vpop.f32.mrb[0].mxu0
    %v756 = vadd.f32 %v191, %v755
    %v757 = vpop.f32.mrb[0].mxu0
    %v758 = vadd.f32 %v195, %v757
    %v759 = vpop.f32.mrb[0].mxu0
    %v760 = vadd.f32 %v191, %v759
    %v761 = vpop.f32.mrb[0].mxu0
    %v762 = vadd.f32 %v195, %v761
    %763 = vmatprep.mubr.bf16.mxu0 %v464
    %764 = vmatmul.mubr.bf16.gmra.mrb[0].mxu0 %v98
    %v765 = vpop.f32.mrb[0].mxu0
    %v766 = vadd.f32 %v191, %v765
    %v767 = vpop.f32.mrb[0].mxu0
    %v768 = vadd.f32 %v195, %v767
    %v769 = vpop.f32.mrb[0].mxu0
    %v770 = vadd.f32 %v191, %v769
    %v771 = vpop.f32.mrb[0].mxu0
    %v772 = vadd.f32 %v195, %v771
    %773 = vmatprep.mubr.bf16.mxu0 %v467
    %774 = vmatmul.mubr.bf16.gmra.mrb[0].mxu0 %v100
    %v775 = vpop.f32.mrb[0].mxu0
    %v776 = vadd.f32 %v191, %v775
    %v777 = vpop.f32.mrb[0].mxu0
    %v778 = vadd.f32 %v195, %v777
    %v779 = vpop.f32.mrb[0].mxu0
    %v780 = vadd.f32 %v191, %v779
    %v781 = vpop.f32.mrb[0].mxu0
    %v782 = vadd.f32 %v195, %v781
    %783 = vmatprep.mubr.bf16.mxu0 %v470
    %784 = vmatmul.mubr.bf16.gmra.mrb[0].mxu0 %v102
    %v785 = vpop.f32.mrb[0].mxu0
    %v786 = vadd.f32 %v191, %v785
    %v787 = vpop.f32.mrb[0].mxu0
    %v788 = vadd.f32 %v195, %v787
    %v789 = vpop.f32.mrb[0].mxu0
    %v790 = vadd.f32 %v191, %v789
    %v791 = vpop.f32.mrb[0].mxu0
    %v792 = vadd.f32 %v195, %v791
    %793 = vmatprep.mubr.bf16.mxu0 %v473
    %794 = vmatmul.mubr.bf16.gmra.mrb[0].mxu0 %v104
    %v795 = vpop.f32.mrb[0].mxu0
    %v796 = vadd.f32 %v191, %v795
    %v797 = vpop.f32.mrb[0].mxu0
    %v798 = vadd.f32 %v195, %v797
    %v799 = vpop.f32.mrb[0].mxu0
    %v800 = vadd.f32 %v191, %v799
    %v801 = vpop.f32.mrb[0].mxu0
    %v802 = vadd.f32 %v195, %v801
    %803 = vmatprep.mubr.bf16.mxu0 %v476
    %804 = vmatmul.mubr.bf16.gmra.mrb[0].mxu0 %v106
    %v805 = vpop.f32.mrb[0].mxu0
    %v806 = vadd.f32 %v191, %v805
    %v807 = vpop.f32.mrb[0].mxu0
    %v808 = vadd.f32 %v195, %v807
    %v809 = vpop.f32.mrb[0].mxu0
    %v810 = vadd.f32 %v191, %v809
    %v811 = vpop.f32.mrb[0].mxu0
    %v812 = vadd.f32 %v195, %v811
    %813 = vmatprep.mubr.bf16.mxu0 %v479
    %814 = vmatmul.mubr.bf16.gmra.mrb[0].mxu0 %v108
    %v815 = vpop.f32.mrb[0].mxu0
    %v816 = vadd.f32 %v191, %v815
    %v817 = vpop.f32.mrb[0].mxu0
    %v818 = vadd.f32 %v195, %v817
    %v819 = vpop.f32.mrb[0].mxu0
    %v820 = vadd.f32 %v191, %v819
    %v821 = vpop.f32.mrb[0].mxu0
    %v822 = vadd.f32 %v195, %v821
    %823 = vmatprep.mubr.bf16.mxu0 %v482
    %824 = vmatmul.mubr.bf16.gmra.mrb[0].mxu0 %v110
    %v825 = vpop.f32.mrb[0].mxu0
    %v826 = vadd.f32 %v191, %v825
    %v827 = vpop.f32.mrb[0].mxu0
    %v828 = vadd.f32 %v195, %v827
    %v829 = vpop.f32.mrb[0].mxu0
    %v830 = vadd.f32 %v191, %v829
    %v831 = vpop.f32.mrb[0].mxu0
    %v832 = vadd.f32 %v195, %v831
    %833 = vmatprep.mubr.bf16.mxu0 %v485
    %834 = vmatmul.mubr.bf16.gmra.mrb[0].mxu0 %v112
    %v835 = vpop.f32.mrb[0].mxu0
    %v836 = vadd.f32 %v191, %v835
    %v837 = vpop.f32.mrb[0].mxu0
    %v838 = vadd.f32 %v195, %v837
    %v839 = vpop.f32.mrb[0].mxu0
    %v840 = vadd.f32 %v191, %v839
    %v841 = vpop.f32.mrb[0].mxu0
    %v842 = vadd.f32 %v195, %v841
    %843 = vmatprep.mubr.bf16.mxu0 %v488
    %844 = vmatmul.mubr.bf16.gmra.mrb[0].mxu0 %v114
    %v845 = vpop.f32.mrb[0].mxu0
    %v846 = vadd.f32 %v191, %v845
    %v847 = vpop.f32.mrb[0].mxu0
    %v848 = vadd.f32 %v195, %v847
    %v849 = vpop.f32.mrb[0].mxu0
    %v850 = vadd.f32 %v191, %v849
    %v851 = vpop.f32.mrb[0].mxu0
    %v852 = vadd.f32 %v195, %v851
    %853 = vmatprep.mubr.bf16.mxu0 %v491
    %854 = vmatmul.mubr.bf16.gmra.mrb[0].mxu0 %v116
    %v855 = vpop.f32.mrb[0].mxu0
    %v856 = vadd.f32 %v191, %v855
    %v857 = vpop.f32.mrb[0].mxu0
    %v858 = vadd.f32 %v195, %v857
    %v859 = vpop.f32.mrb[0].mxu0
    %v860 = vadd.f32 %v191, %v859
    %v861 = vpop.f32.mrb[0].mxu0
    %v862 = vadd.f32 %v195, %v861
    %863 = vmatprep.mubr.bf16.mxu0 %v494
    %864 = vmatmul.mubr.bf16.gmra.mrb[0].mxu0 %v118
    %v865 = vpop.f32.mrb[0].mxu0
    %v866 = vadd.f32 %v191, %v865
    %v867 = vpop.f32.mrb[0].mxu0
    %v868 = vadd.f32 %v195, %v867
    %v869 = vpop.f32.mrb[0].mxu0
    %v870 = vadd.f32 %v191, %v869
    %v871 = vpop.f32.mrb[0].mxu0
    %v872 = vadd.f32 %v195, %v871
    %873 = vmatprep.mubr.bf16.mxu0 %v497
    %874 = vmatmul.mubr.bf16.gmra.mrb[0].mxu0 %v120
    %v875 = vpop.f32.mrb[0].mxu0
    %v876 = vadd.f32 %v191, %v875
    %v877 = vpop.f32.mrb[0].mxu0
    %v878 = vadd.f32 %v195, %v877
    %v879 = vpop.f32.mrb[0].mxu0
    %v880 = vadd.f32 %v191, %v879
    %v881 = vpop.f32.mrb[0].mxu0
    %v882 = vadd.f32 %v195, %v881
    %883 = vmatprep.mubr.bf16.mxu0 %v500
    %884 = vmatmul.mubr.bf16.gmra.mrb[0].mxu0 %v122
    %v885 = vpop.f32.mrb[0].mxu0
    %v886 = vadd.f32 %v191, %v885
    %v887 = vpop.f32.mrb[0].mxu0
    %v888 = vadd.f32 %v195, %v887
    %v889 = vpop.f32.mrb[0].mxu0
    %v890 = vadd.f32 %v191, %v889
    %v891 = vpop.f32.mrb[0].mxu0
    %v892 = vadd.f32 %v195, %v891
    %893 = vmatprep.mubr.bf16.mxu0 %v503
    %894 = vmatmul.mubr.bf16.gmra.mrb[0].mxu0 %v124
    %v895 = vpop.f32.mrb[0].mxu0
    %v896 = vadd.f32 %v191, %v895
    %v897 = vpop.f32.mrb[0].mxu0
    %v898 = vadd.f32 %v195, %v897
    %v899 = vpop.f32.mrb[0].mxu0
    %v900 = vadd.f32 %v191, %v899
    %v901 = vpop.f32.mrb[0].mxu0
    %v902 = vadd.f32 %v195, %v901
    %903 = vdwg.mxu0
    %vm904 = vcmp.ge.f32.partialorder %v553, 0.0
    %vm905 = vcmp.ge.f32.partialorder %v555, 0.0
    %vm906 = vcmp.ge.f32.partialorder %v746, 0.0
    %vm907 = vcmp.ge.f32.partialorder %v748, 0.0
    %vm908 = vcmp.ge.f32.partialorder %v557, 0.0
    %vm909 = vcmp.ge.f32.partialorder %v559, 0.0
    %vm910 = vcmp.ge.f32.partialorder %v750, 0.0
    %vm911 = vcmp.ge.f32.partialorder %v752, 0.0
    %vm912 = vcmp.ge.f32.partialorder %v563, 0.0
    %vm913 = vcmp.ge.f32.partialorder %v565, 0.0
    %vm914 = vcmp.ge.f32.partialorder %v756, 0.0
    %vm915 = vcmp.ge.f32.partialorder %v758, 0.0
    %vm916 = vcmp.ge.f32.partialorder %v567, 0.0
    %vm917 = vcmp.ge.f32.partialorder %v569, 0.0
    %vm918 = vcmp.ge.f32.partialorder %v760, 0.0
    %vm919 = vcmp.ge.f32.partialorder %v762, 0.0
    %vm920 = vcmp.ge.f32.partialorder %v573, 0.0
    %vm921 = vcmp.ge.f32.partialorder %v575, 0.0
    %vm922 = vcmp.ge.f32.partialorder %v766, 0.0
    %vm923 = vcmp.ge.f32.partialorder %v768, 0.0
    %vm924 = vcmp.ge.f32.partialorder %v577, 0.0
    %vm925 = vcmp.ge.f32.partialorder %v579, 0.0
    %vm926 = vcmp.ge.f32.partialorder %v770, 0.0
    %vm927 = vcmp.ge.f32.partialorder %v772, 0.0
    %vm928 = vcmp.ge.f32.partialorder %v583, 0.0
    %vm929 = vcmp.ge.f32.partialorder %v585, 0.0
    %vm930 = vcmp.ge.f32.partialorder %v776, 0.0
    %vm931 = vcmp.ge.f32.partialorder %v778, 0.0
    %vm932 = vcmp.ge.f32.partialorder %v587, 0.0
    %vm933 = vcmp.ge.f32.partialorder %v589, 0.0
    %vm934 = vcmp.ge.f32.partialorder %v780, 0.0
    %vm935 = vcmp.ge.f32.partialorder %v782, 0.0
    %vm936 = vcmp.ge.f32.partialorder %v593, 0.0
    %vm937 = vcmp.ge.f32.partialorder %v595, 0.0
    %vm938 = vcmp.ge.f32.partialorder %v786, 0.0
    %vm939 = vcmp.ge.f32.partialorder %v788, 0.0
    %vm940 = vcmp.ge.f32.partialorder %v597, 0.0
    %vm941 = vcmp.ge.f32.partialorder %v599, 0.0
    %vm942 = vcmp.ge.f32.partialorder %v790, 0.0
    %vm943 = vcmp.ge.f32.partialorder %v792, 0.0
    %vm944 = vcmp.ge.f32.partialorder %v603, 0.0
    %vm945 = vcmp.ge.f32.partialorder %v605, 0.0
    %vm946 = vcmp.ge.f32.partialorder %v796, 0.0
    %vm947 = vcmp.ge.f32.partialorder %v798, 0.0
    %vm948 = vcmp.ge.f32.partialorder %v607, 0.0
    %vm949 = vcmp.ge.f32.partialorder %v609, 0.0
    %vm950 = vcmp.ge.f32.partialorder %v800, 0.0
    %vm951 = vcmp.ge.f32.partialorder %v802, 0.0
    %vm952 = vcmp.ge.f32.partialorder %v613, 0.0
    %vm953 = vcmp.ge.f32.partialorder %v615, 0.0
    %vm954 = vcmp.ge.f32.partialorder %v806, 0.0
    %vm955 = vcmp.ge.f32.partialorder %v808, 0.0
    %vm956 = vcmp.ge.f32.partialorder %v617, 0.0
    %vm957 = vcmp.ge.f32.partialorder %v619, 0.0
    %vm958 = vcmp.ge.f32.partialorder %v810, 0.0
    %vm959 = vcmp.ge.f32.partialorder %v812, 0.0
    %vm960 = vcmp.ge.f32.partialorder %v623, 0.0
    %vm961 = vcmp.ge.f32.partialorder %v625, 0.0
    %vm962 = vcmp.ge.f32.partialorder %v816, 0.0
    %vm963 = vcmp.ge.f32.partialorder %v818, 0.0
    %vm964 = vcmp.ge.f32.partialorder %v627, 0.0
    %vm965 = vcmp.ge.f32.partialorder %v629, 0.0
    %vm966 = vcmp.ge.f32.partialorder %v820, 0.0
    %vm967 = vcmp.ge.f32.partialorder %v822, 0.0
    %vm968 = vcmp.ge.f32.partialorder %v633, 0.0
    %vm969 = vcmp.ge.f32.partialorder %v635, 0.0
    %vm970 = vcmp.ge.f32.partialorder %v826, 0.0
    %vm971 = vcmp.ge.f32.partialorder %v828, 0.0
    %vm972 = vcmp.ge.f32.partialorder %v637, 0.0
    %vm973 = vcmp.ge.f32.partialorder %v639, 0.0
    %vm974 = vcmp.ge.f32.partialorder %v830, 0.0
    %vm975 = vcmp.ge.f32.partialorder %v832, 0.0
    %vm976 = vcmp.ge.f32.partialorder %v643, 0.0
    %vm977 = vcmp.ge.f32.partialorder %v645, 0.0
    %vm978 = vcmp.ge.f32.partialorder %v836, 0.0
    %vm979 = vcmp.ge.f32.partialorder %v838, 0.0
    %vm980 = vcmp.ge.f32.partialorder %v647, 0.0
    %vm981 = vcmp.ge.f32.partialorder %v649, 0.0
    %vm982 = vcmp.ge.f32.partialorder %v840, 0.0
    %vm983 = vcmp.ge.f32.partialorder %v842, 0.0
    %vm984 = vcmp.ge.f32.partialorder %v653, 0.0
    %vm985 = vcmp.ge.f32.partialorder %v655, 0.0
    %vm986 = vcmp.ge.f32.partialorder %v846, 0.0
    %vm987 = vcmp.ge.f32.partialorder %v848, 0.0
    %vm988 = vcmp.ge.f32.partialorder %v657, 0.0
    %vm989 = vcmp.ge.f32.partialorder %v659, 0.0
    %vm990 = vcmp.ge.f32.partialorder %v850, 0.0
    %vm991 = vcmp.ge.f32.partialorder %v852, 0.0
    %vm992 = vcmp.ge.f32.partialorder %v663, 0.0
    %vm993 = vcmp.ge.f32.partialorder %v665, 0.0
    %vm994 = vcmp.ge.f32.partialorder %v856, 0.0
    %vm995 = vcmp.ge.f32.partialorder %v858, 0.0
    %vm996 = vcmp.ge.f32.partialorder %v667, 0.0
    %vm997 = vcmp.ge.f32.partialorder %v669, 0.0
    %vm998 = vcmp.ge.f32.partialorder %v860, 0.0
    %vm999 = vcmp.ge.f32.partialorder %v862, 0.0
    %vm1000 = vcmp.ge.f32.partialorder %v673, 0.0
    %vm1001 = vcmp.ge.f32.partialorder %v675, 0.0
    %vm1002 = vcmp.ge.f32.partialorder %v866, 0.0
    %vm1003 = vcmp.ge.f32.partialorder %v868, 0.0
    %vm1004 = vcmp.ge.f32.partialorder %v677, 0.0
    %vm1005 = vcmp.ge.f32.partialorder %v679, 0.0
    %vm1006 = vcmp.ge.f32.partialorder %v870, 0.0
    %vm1007 = vcmp.ge.f32.partialorder %v872, 0.0
    %vm1008 = vcmp.ge.f32.partialorder %v683, 0.0
    %vm1009 = vcmp.ge.f32.partialorder %v685, 0.0
    %vm1010 = vcmp.ge.f32.partialorder %v876, 0.0
    %vm1011 = vcmp.ge.f32.partialorder %v878, 0.0
    %vm1012 = vcmp.ge.f32.partialorder %v687, 0.0
    %vm1013 = vcmp.ge.f32.partialorder %v689, 0.0
    %vm1014 = vcmp.ge.f32.partialorder %v880, 0.0
    %vm1015 = vcmp.ge.f32.partialorder %v882, 0.0
    %vm1016 = vcmp.ge.f32.partialorder %v693, 0.0
    %vm1017 = vcmp.ge.f32.partialorder %v695, 0.0
    %vm1018 = vcmp.ge.f32.partialorder %v886, 0.0
    %vm1019 = vcmp.ge.f32.partialorder %v888, 0.0
    %vm1020 = vcmp.ge.f32.partialorder %v697, 0.0
    %vm1021 = vcmp.ge.f32.partialorder %v699, 0.0
    %vm1022 = vcmp.ge.f32.partialorder %v890, 0.0
    %vm1023 = vcmp.ge.f32.partialorder %v892, 0.0
    %vm1024 = vcmp.ge.f32.partialorder %v703, 0.0
    %vm1025 = vcmp.ge.f32.partialorder %v705, 0.0
    %vm1026 = vcmp.ge.f32.partialorder %v896, 0.0
    %vm1027 = vcmp.ge.f32.partialorder %v898, 0.0
    %vm1028 = vcmp.ge.f32.partialorder %v707, 0.0
    %vm1029 = vcmp.ge.f32.partialorder %v709, 0.0
    %vm1030 = vcmp.ge.f32.partialorder %v900, 0.0
    %vm1031 = vcmp.ge.f32.partialorder %v902, 0.0
    %v1032 = vmul.f32 %v553, 0.02
    %v1033 = vmul.f32 %v555, 0.02
    %v1034 = vmul.f32 %v746, 0.02
    %v1035 = vmul.f32 %v748, 0.02
    %v1036 = vmul.f32 %v557, 0.02
    %v1037 = vmul.f32 %v559, 0.02
    %v1038 = vmul.f32 %v750, 0.02
    %v1039 = vmul.f32 %v752, 0.02
    %v1040 = vmul.f32 %v563, 0.02
    %v1041 = vmul.f32 %v565, 0.02
    %v1042 = vmul.f32 %v756, 0.02
    %v1043 = vmul.f32 %v758, 0.02
    %v1044 = vmul.f32 %v567, 0.02
    %v1045 = vmul.f32 %v569, 0.02
    %v1046 = vmul.f32 %v760, 0.02
    %v1047 = vmul.f32 %v762, 0.02
    %v1048 = vmul.f32 %v573, 0.02
    %v1049 = vmul.f32 %v575, 0.02
    %v1050 = vmul.f32 %v766, 0.02
    %v1051 = vmul.f32 %v768, 0.02
    %v1052 = vmul.f32 %v577, 0.02
    %v1053 = vmul.f32 %v579, 0.02
    %v1054 = vmul.f32 %v770, 0.02
    %v1055 = vmul.f32 %v772, 0.02
    %v1056 = vmul.f32 %v583, 0.02
    %v1057 = vmul.f32 %v585, 0.02
    %v1058 = vmul.f32 %v776, 0.02
    %v1059 = vmul.f32 %v778, 0.02
    %v1060 = vmul.f32 %v587, 0.02
    %v1061 = vmul.f32 %v589, 0.02
    %v1062 = vmul.f32 %v780, 0.02
    %v1063 = vmul.f32 %v782, 0.02
    %v1064 = vmul.f32 %v593, 0.02
    %v1065 = vmul.f32 %v595, 0.02
    %v1066 = vmul.f32 %v786, 0.02
    %v1067 = vmul.f32 %v788, 0.02
    %v1068 = vmul.f32 %v597, 0.02
    %v1069 = vmul.f32 %v599, 0.02
    %v1070 = vmul.f32 %v790, 0.02
    %v1071 = vmul.f32 %v792, 0.02
    %v1072 = vmul.f32 %v603, 0.02
    %v1073 = vmul.f32 %v605, 0.02
    %v1074 = vmul.f32 %v796, 0.02
    %v1075 = vmul.f32 %v798, 0.02
    %v1076 = vmul.f32 %v607, 0.02
    %v1077 = vmul.f32 %v609, 0.02
    %v1078 = vmul.f32 %v800, 0.02
    %v1079 = vmul.f32 %v802, 0.02
    %v1080 = vmul.f32 %v613, 0.02
    %v1081 = vmul.f32 %v615, 0.02
    %v1082 = vmul.f32 %v806, 0.02
    %v1083 = vmul.f32 %v808, 0.02
    %v1084 = vmul.f32 %v617, 0.02
    %v1085 = vmul.f32 %v619, 0.02
    %v1086 = vmul.f32 %v810, 0.02
    %v1087 = vmul.f32 %v812, 0.02
    %v1088 = vmul.f32 %v623, 0.02
    %v1089 = vmul.f32 %v625, 0.02
    %v1090 = vmul.f32 %v816, 0.02
    %v1091 = vmul.f32 %v818, 0.02
    %v1092 = vmul.f32 %v627, 0.02
    %v1093 = vmul.f32 %v629, 0.02
    %v1094 = vmul.f32 %v820, 0.02
    %v1095 = vmul.f32 %v822, 0.02
    %v1096 = vmul.f32 %v633, 0.02
    %v1097 = vmul.f32 %v635, 0.02
    %v1098 = vmul.f32 %v826, 0.02
    %v1099 = vmul.f32 %v828, 0.02
    %v1100 = vmul.f32 %v637, 0.02
    %v1101 = vmul.f32 %v639, 0.02
    %v1102 = vmul.f32 %v830, 0.02
    %v1103 = vmul.f32 %v832, 0.02
    %v1104 = vmul.f32 %v643, 0.02
    %v1105 = vmul.f32 %v645, 0.02
    %v1106 = vmul.f32 %v836, 0.02
    %v1107 = vmul.f32 %v838, 0.02
    %v1108 = vmul.f32 %v647, 0.02
    %v1109 = vmul.f32 %v649, 0.02
    %v1110 = vmul.f32 %v840, 0.02
    %v1111 = vmul.f32 %v842, 0.02
    %v1112 = vmul.f32 %v653, 0.02
    %v1113 = vmul.f32 %v655, 0.02
    %v1114 = vmul.f32 %v846, 0.02
    %v1115 = vmul.f32 %v848, 0.02
    %v1116 = vmul.f32 %v657, 0.02
    %v1117 = vmul.f32 %v659, 0.02
    %v1118 = vmul.f32 %v850, 0.02
    %v1119 = vmul.f32 %v852, 0.02
    %v1120 = vmul.f32 %v663, 0.02
    %v1121 = vmul.f32 %v665, 0.02
    %v1122 = vmul.f32 %v856, 0.02
    %v1123 = vmul.f32 %v858, 0.02
    %v1124 = vmul.f32 %v667, 0.02
    %v1125 = vmul.f32 %v669, 0.02
    %v1126 = vmul.f32 %v860, 0.02
    %v1127 = vmul.f32 %v862, 0.02
    %v1128 = vmul.f32 %v673, 0.02
    %v1129 = vmul.f32 %v675, 0.02
    %v1130 = vmul.f32 %v866, 0.02
    %v1131 = vmul.f32 %v868, 0.02
    %v1132 = vmul.f32 %v677, 0.02
    %v1133 = vmul.f32 %v679, 0.02
    %v1134 = vmul.f32 %v870, 0.02
    %v1135 = vmul.f32 %v872, 0.02
    %v1136 = vmul.f32 %v683, 0.02
    %v1137 = vmul.f32 %v685, 0.02
    %v1138 = vmul.f32 %v876, 0.02
    %v1139 = vmul.f32 %v878, 0.02
    %v1140 = vmul.f32 %v687, 0.02
    %v1141 = vmul.f32 %v689, 0.02
    %v1142 = vmul.f32 %v880, 0.02
    %v1143 = vmul.f32 %v882, 0.02
    %v1144 = vmul.f32 %v693, 0.02
    %v1145 = vmul.f32 %v695, 0.02
    %v1146 = vmul.f32 %v886, 0.02
    %v1147 = vmul.f32 %v888, 0.02
    %v1148 = vmul.f32 %v697, 0.02
    %v1149 = vmul.f32 %v699, 0.02
    %v1150 = vmul.f32 %v890, 0.02
    %v1151 = vmul.f32 %v892, 0.02
    %v1152 = vmul.f32 %v703, 0.02
    %v1153 = vmul.f32 %v705, 0.02
    %v1154 = vmul.f32 %v896, 0.02
    %v1155 = vmul.f32 %v898, 0.02
    %v1156 = vmul.f32 %v707, 0.02
    %v1157 = vmul.f32 %v709, 0.02
    %v1158 = vmul.f32 %v900, 0.02
    %v1159 = vmul.f32 %v902, 0.02
    %v1160 = vsel %vm904, %v553, %v1032
    %v1161 = vsel %vm905, %v555, %v1033
    %v1162 = vsel %vm906, %v746, %v1034
    %v1163 = vsel %vm907, %v748, %v1035
    %v1164 = vsel %vm908, %v557, %v1036
    %v1165 = vsel %vm909, %v559, %v1037
    %v1166 = vsel %vm910, %v750, %v1038
    %v1167 = vsel %vm911, %v752, %v1039
    %v1168 = vsel %vm912, %v563, %v1040
    %v1169 = vsel %vm913, %v565, %v1041
    %v1170 = vsel %vm914, %v756, %v1042
    %v1171 = vsel %vm915, %v758, %v1043
    %v1172 = vsel %vm916, %v567, %v1044
    %v1173 = vsel %vm917, %v569, %v1045
    %v1174 = vsel %vm918, %v760, %v1046
    %v1175 = vsel %vm919, %v762, %v1047
    %v1176 = vsel %vm920, %v573, %v1048
    %v1177 = vsel %vm921, %v575, %v1049
    %v1178 = vsel %vm922, %v766, %v1050
    %v1179 = vsel %vm923, %v768, %v1051
    %v1180 = vsel %vm924, %v577, %v1052
    %v1181 = vsel %vm925, %v579, %v1053
    %v1182 = vsel %vm926, %v770, %v1054
    %v1183 = vsel %vm927, %v772, %v1055
    %v1184 = vsel %vm928, %v583, %v1056
    %v1185 = vsel %vm929, %v585, %v1057
    %v1186 = vsel %vm930, %v776, %v1058
    %v1187 = vsel %vm931, %v778, %v1059
    %v1188 = vsel %vm932, %v587, %v1060
    %v1189 = vsel %vm933, %v589, %v1061
    %v1190 = vsel %vm934, %v780, %v1062
    %v1191 = vsel %vm935, %v782, %v1063
    %v1192 = vsel %vm936, %v593, %v1064
    %v1193 = vsel %vm937, %v595, %v1065
    %v1194 = vsel %vm938, %v786, %v1066
    %v1195 = vsel %vm939, %v788, %v1067
    %v1196 = vsel %vm940, %v597, %v1068
    %v1197 = vsel %vm941, %v599, %v1069
    %v1198 = vsel %vm942, %v790, %v1070
    %v1199 = vsel %vm943, %v792, %v1071
    %v1200 = vsel %vm944, %v603, %v1072
    %v1201 = vsel %vm945, %v605, %v1073
    %v1202 = vsel %vm946, %v796, %v1074
    %v1203 = vsel %vm947, %v798, %v1075
    %v1204 = vsel %vm948, %v607, %v1076
    %v1205 = vsel %vm949, %v609, %v1077
    %v1206 = vsel %vm950, %v800, %v1078
    %v1207 = vsel %vm951, %v802, %v1079
    %v1208 = vsel %vm952, %v613, %v1080
    %v1209 = vsel %vm953, %v615, %v1081
    %v1210 = vsel %vm954, %v806, %v1082
    %v1211 = vsel %vm955, %v808, %v1083
    %v1212 = vsel %vm956, %v617, %v1084
    %v1213 = vsel %vm957, %v619, %v1085
    %v1214 = vsel %vm958, %v810, %v1086
    %v1215 = vsel %vm959, %v812, %v1087
    %v1216 = vsel %vm960, %v623, %v1088
    %v1217 = vsel %vm961, %v625, %v1089
    %v1218 = vsel %vm962, %v816, %v1090
    %v1219 = vsel %vm963, %v818, %v1091
    %v1220 = vsel %vm964, %v627, %v1092
    %v1221 = vsel %vm965, %v629, %v1093
    %v1222 = vsel %vm966, %v820, %v1094
    %v1223 = vsel %vm967, %v822, %v1095
    %v1224 = vsel %vm968, %v633, %v1096
    %v1225 = vsel %vm969, %v635, %v1097
    %v1226 = vsel %vm970, %v826, %v1098
    %v1227 = vsel %vm971, %v828, %v1099
    %v1228 = vsel %vm972, %v637, %v1100
    %v1229 = vsel %vm973, %v639, %v1101
    %v1230 = vsel %vm974, %v830, %v1102
    %v1231 = vsel %vm975, %v832, %v1103
    %v1232 = vsel %vm976, %v643, %v1104
    %v1233 = vsel %vm977, %v645, %v1105
    %v1234 = vsel %vm978, %v836, %v1106
    %v1235 = vsel %vm979, %v838, %v1107
    %v1236 = vsel %vm980, %v647, %v1108
    %v1237 = vsel %vm981, %v649, %v1109
    %v1238 = vsel %vm982, %v840, %v1110
    %v1239 = vsel %vm983, %v842, %v1111
    %v1240 = vsel %vm984, %v653, %v1112
    %v1241 = vsel %vm985, %v655, %v1113
    %v1242 = vsel %vm986, %v846, %v1114
    %v1243 = vsel %vm987, %v848, %v1115
    %v1244 = vsel %vm988, %v657, %v1116
    %v1245 = vsel %vm989, %v659, %v1117
    %v1246 = vsel %vm990, %v850, %v1118
    %v1247 = vsel %vm991, %v852, %v1119
    %v1248 = vsel %vm992, %v663, %v1120
    %v1249 = vsel %vm993, %v665, %v1121
    %v1250 = vsel %vm994, %v856, %v1122
    %v1251 = vsel %vm995, %v858, %v1123
    %v1252 = vsel %vm996, %v667, %v1124
    %v1253 = vsel %vm997, %v669, %v1125
    %v1254 = vsel %vm998, %v860, %v1126
    %v1255 = vsel %vm999, %v862, %v1127
    %v1256 = vsel %vm1000, %v673, %v1128
    %v1257 = vsel %vm1001, %v675, %v1129
    %v1258 = vsel %vm1002, %v866, %v1130
    %v1259 = vsel %vm1003, %v868, %v1131
    %v1260 = vsel %vm1004, %v677, %v1132
    %v1261 = vsel %vm1005, %v679, %v1133
    %v1262 = vsel %vm1006, %v870, %v1134
    %v1263 = vsel %vm1007, %v872, %v1135
    %v1264 = vsel %vm1008, %v683, %v1136
    %v1265 = vsel %vm1009, %v685, %v1137
    %v1266 = vsel %vm1010, %v876, %v1138
    %v1267 = vsel %vm1011, %v878, %v1139
    %v1268 = vsel %vm1012, %v687, %v1140
    %v1269 = vsel %vm1013, %v689, %v1141
    %v1270 = vsel %vm1014, %v880, %v1142
    %v1271 = vsel %vm1015, %v882, %v1143
    %v1272 = vsel %vm1016, %v693, %v1144
    %v1273 = vsel %vm1017, %v695, %v1145
    %v1274 = vsel %vm1018, %v886, %v1146
    %v1275 = vsel %vm1019, %v888, %v1147
    %v1276 = vsel %vm1020, %v697, %v1148
    %v1277 = vsel %vm1021, %v699, %v1149
    %v1278 = vsel %vm1022, %v890, %v1150
    %v1279 = vsel %vm1023, %v892, %v1151
    %v1280 = vsel %vm1024, %v703, %v1152
    %v1281 = vsel %vm1025, %v705, %v1153
    %v1282 = vsel %vm1026, %v896, %v1154
    %v1283 = vsel %vm1027, %v898, %v1155
    %v1284 = vsel %vm1028, %v707, %v1156
    %v1285 = vsel %vm1029, %v709, %v1157
    %v1286 = vsel %vm1030, %v900, %v1158
    %v1287 = vsel %vm1031, %v902, %v1159
    %v1288 = vpack.c.bf16 %v1164, %v1160
    %v1289 = vpack.c.bf16 %v1165, %v1161
    %v1290 = vpack.c.bf16 %v1166, %v1162
    %v1291 = vpack.c.bf16 %v1167, %v1163
    %v1292 = vpack.c.bf16 %v1172, %v1168
    %v1293 = vpack.c.bf16 %v1173, %v1169
    %v1294 = vpack.c.bf16 %v1174, %v1170
    %v1295 = vpack.c.bf16 %v1175, %v1171
    %v1296 = vpack.c.bf16 %v1180, %v1176
    %v1297 = vpack.c.bf16 %v1181, %v1177
    %v1298 = vpack.c.bf16 %v1182, %v1178
    %v1299 = vpack.c.bf16 %v1183, %v1179
    %v1300 = vpack.c.bf16 %v1188, %v1184
    %v1301 = vpack.c.bf16 %v1189, %v1185
    %v1302 = vpack.c.bf16 %v1190, %v1186
    %v1303 = vpack.c.bf16 %v1191, %v1187
    %v1304 = vpack.c.bf16 %v1196, %v1192
    %v1305 = vpack.c.bf16 %v1197, %v1193
    %v1306 = vpack.c.bf16 %v1198, %v1194
    %v1307 = vpack.c.bf16 %v1199, %v1195
    %v1308 = vpack.c.bf16 %v1204, %v1200
    %v1309 = vpack.c.bf16 %v1205, %v1201
    %v1310 = vpack.c.bf16 %v1206, %v1202
    %v1311 = vpack.c.bf16 %v1207, %v1203
    %v1312 = vpack.c.bf16 %v1212, %v1208
    %v1313 = vpack.c.bf16 %v1213, %v1209
    %v1314 = vpack.c.bf16 %v1214, %v1210
    %v1315 = vpack.c.bf16 %v1215, %v1211
    %v1316 = vpack.c.bf16 %v1220, %v1216
    %v1317 = vpack.c.bf16 %v1221, %v1217
    %v1318 = vpack.c.bf16 %v1222, %v1218
    %v1319 = vpack.c.bf16 %v1223, %v1219
    %v1320 = vpack.c.bf16 %v1228, %v1224
    %v1321 = vpack.c.bf16 %v1229, %v1225
    %v1322 = vpack.c.bf16 %v1230, %v1226
    %v1323 = vpack.c.bf16 %v1231, %v1227
    %v1324 = vpack.c.bf16 %v1236, %v1232
    %v1325 = vpack.c.bf16 %v1237, %v1233
    %v1326 = vpack.c.bf16 %v1238, %v1234
    %v1327 = vpack.c.bf16 %v1239, %v1235
    %v1328 = vpack.c.bf16 %v1244, %v1240
    %v1329 = vpack.c.bf16 %v1245, %v1241
    %v1330 = vpack.c.bf16 %v1246, %v1242
    %v1331 = vpack.c.bf16 %v1247, %v1243
    %v1332 = vpack.c.bf16 %v1252, %v1248
    %v1333 = vpack.c.bf16 %v1253, %v1249
    %v1334 = vpack.c.bf16 %v1254, %v1250
    %v1335 = vpack.c.bf16 %v1255, %v1251
    %v1336 = vpack.c.bf16 %v1260, %v1256
    %v1337 = vpack.c.bf16 %v1261, %v1257
    %v1338 = vpack.c.bf16 %v1262, %v1258
    %v1339 = vpack.c.bf16 %v1263, %v1259
    %v1340 = vpack.c.bf16 %v1268, %v1264
    %v1341 = vpack.c.bf16 %v1269, %v1265
    %v1342 = vpack.c.bf16 %v1270, %v1266
    %v1343 = vpack.c.bf16 %v1271, %v1267
    %v1344 = vpack.c.bf16 %v1276, %v1272
    %v1345 = vpack.c.bf16 %v1277, %v1273
    %v1346 = vpack.c.bf16 %v1278, %v1274
    %v1347 = vpack.c.bf16 %v1279, %v1275
    %v1348 = vpack.c.bf16 %v1284, %v1280
    %v1349 = vpack.c.bf16 %v1285, %v1281
    %v1350 = vpack.c.bf16 %v1286, %v1282
    %v1351 = vpack.c.bf16 %v1287, %v1283
    %v1352 = vld [vmem:[%s3] sm:$0xff]
    %v1353 = vld [vmem:[%s3 + $0x8] sm:$0xff]
    %v1354 = vld [vmem:[%s3 + $0x10] sm:$0xff]
    %v1355 = vld [vmem:[%s3 + $0x18] sm:$0xff]
    %v1356 = vld [vmem:[%s3 + $0x20] sm:$0xff]
    %v1357 = vld [vmem:[%s3 + $0x28] sm:$0xff]
    %v1358 = vld [vmem:[%s3 + $0x30] sm:$0xff]
    %v1359 = vld [vmem:[%s3 + $0x38] sm:$0xff]
    %v1360 = vld [vmem:[%s3 + $0x40] sm:$0xff]
    %v1361 = vld [vmem:[%s3 + $0x48] sm:$0xff]
    %v1362 = vld [vmem:[%s3 + $0x50] sm:$0xff]
    %v1363 = vld [vmem:[%s3 + $0x58] sm:$0xff]
    %v1364 = vld [vmem:[%s3 + $0x60] sm:$0xff]
    %v1365 = vld [vmem:[%s3 + $0x68] sm:$0xff]
    %v1366 = vld [vmem:[%s3 + $0x70] sm:$0xff]
    %v1367 = vld [vmem:[%s3 + $0x78] sm:$0xff]
    %v1368 = vld [vmem:[%s3 + $0x80] sm:$0xff]
    %v1369 = vld [vmem:[%s3 + $0x88] sm:$0xff]
    %v1370 = vld [vmem:[%s3 + $0x90] sm:$0xff]
    %v1371 = vld [vmem:[%s3 + $0x98] sm:$0xff]
    %v1372 = vld [vmem:[%s3 + $0xa0] sm:$0xff]
    %v1373 = vld [vmem:[%s3 + $0xa8] sm:$0xff]
    %v1374 = vld [vmem:[%s3 + $0xb0] sm:$0xff]
    %v1375 = vld [vmem:[%s3 + $0xb8] sm:$0xff]
    %v1376 = vld [vmem:[%s3 + $0xc0] sm:$0xff]
    %v1377 = vld [vmem:[%s3 + $0xc8] sm:$0xff]
    %v1378 = vld [vmem:[%s3 + $0xd0] sm:$0xff]
    %v1379 = vld [vmem:[%s3 + $0xd8] sm:$0xff]
    %v1380 = vld [vmem:[%s3 + $0xe0] sm:$0xff]
    %v1381 = vld [vmem:[%s3 + $0xe8] sm:$0xff]
    %v1382 = vld [vmem:[%s3 + $0xf0] sm:$0xff]
    %v1383 = vld [vmem:[%s3 + $0xf8] sm:$0xff]
    %v1384 = vld [vmem:[%s3 + $0x100] sm:$0xff]
    %v1385 = vld [vmem:[%s3 + $0x108] sm:$0xff]
    %v1386 = vld [vmem:[%s3 + $0x110] sm:$0xff]
    %v1387 = vld [vmem:[%s3 + $0x118] sm:$0xff]
    %v1388 = vld [vmem:[%s3 + $0x120] sm:$0xff]
    %v1389 = vld [vmem:[%s3 + $0x128] sm:$0xff]
    %v1390 = vld [vmem:[%s3 + $0x130] sm:$0xff]
    %v1391 = vld [vmem:[%s3 + $0x138] sm:$0xff]
    %v1392 = vld [vmem:[%s3 + $0x140] sm:$0xff]
    %v1393 = vld [vmem:[%s3 + $0x148] sm:$0xff]
    %v1394 = vld [vmem:[%s3 + $0x150] sm:$0xff]
    %v1395 = vld [vmem:[%s3 + $0x158] sm:$0xff]
    %v1396 = vld [vmem:[%s3 + $0x160] sm:$0xff]
    %v1397 = vld [vmem:[%s3 + $0x168] sm:$0xff]
    %v1398 = vld [vmem:[%s3 + $0x170] sm:$0xff]
    %v1399 = vld [vmem:[%s3 + $0x178] sm:$0xff]
    %v1400 = vld [vmem:[%s3 + $0x180] sm:$0xff]
    %v1401 = vld [vmem:[%s3 + $0x188] sm:$0xff]
    %v1402 = vld [vmem:[%s3 + $0x190] sm:$0xff]
    %v1403 = vld [vmem:[%s3 + $0x198] sm:$0xff]
    %v1404 = vld [vmem:[%s3 + $0x1a0] sm:$0xff]
    %v1405 = vld [vmem:[%s3 + $0x1a8] sm:$0xff]
    %v1406 = vld [vmem:[%s3 + $0x1b0] sm:$0xff]
    %v1407 = vld [vmem:[%s3 + $0x1b8] sm:$0xff]
    %v1408 = vld [vmem:[%s3 + $0x1c0] sm:$0xff]
    %v1409 = vld [vmem:[%s3 + $0x1c8] sm:$0xff]
    %v1410 = vld [vmem:[%s3 + $0x1d0] sm:$0xff]
    %v1411 = vld [vmem:[%s3 + $0x1d8] sm:$0xff]
    %v1412 = vld [vmem:[%s3 + $0x1e0] sm:$0xff]
    %v1413 = vld [vmem:[%s3 + $0x1e8] sm:$0xff]
    %v1414 = vld [vmem:[%s3 + $0x1f0] sm:$0xff]
    %v1415 = vld [vmem:[%s3 + $0x1f8] sm:$0xff]
    %v1416 = vld [vmem:[%s4] sm:$0x3]
    %v1418 = vlaneseq
    %v1419 = vshrl.u32 %v1418, 7
    %v1420 = vsub.s32 0, %v1419
    %v1421 = vrot.slane %v1416, %v1420
    %v1422 = vlaneseq
    %v1423 = vshrl.u32 %v1422, 7
    %v1424 = vsub.s32 1, %v1423
    %v1425 = vrot.slane %v1416, %v1424
    %v1492 = vunpack.c.l.b16 %v1352
    %v1493 = vunpack.c.h.b16 %v1352
    %v1494 = vunpack.c.l.b16 %v1353
    %v1495 = vunpack.c.h.b16 %v1353
    %v1496 = vunpack.c.l.b16 %v1354
    %v1497 = vunpack.c.h.b16 %v1354
    %v1498 = vunpack.c.l.b16 %v1355
    %v1499 = vunpack.c.h.b16 %v1355
    %v1500 = vunpack.c.l.b16 %v1356
    %v1501 = vunpack.c.h.b16 %v1356
    %v1502 = vunpack.c.l.b16 %v1357
    %v1503 = vunpack.c.h.b16 %v1357
    %v1504 = vunpack.c.l.b16 %v1358
    %v1505 = vunpack.c.h.b16 %v1358
    %v1506 = vunpack.c.l.b16 %v1359
    %v1507 = vunpack.c.h.b16 %v1359
    %v1508 = vunpack.c.l.b16 %v1360
    %v1509 = vunpack.c.h.b16 %v1360
    %v1510 = vunpack.c.l.b16 %v1361
    %v1511 = vunpack.c.h.b16 %v1361
    %v1512 = vunpack.c.l.b16 %v1362
    %v1513 = vunpack.c.h.b16 %v1362
    %v1514 = vunpack.c.l.b16 %v1363
    %v1515 = vunpack.c.h.b16 %v1363
    %v1516 = vunpack.c.l.b16 %v1364
    %v1517 = vunpack.c.h.b16 %v1364
    %v1518 = vunpack.c.l.b16 %v1365
    %v1519 = vunpack.c.h.b16 %v1365
    %v1520 = vunpack.c.l.b16 %v1366
    %v1521 = vunpack.c.h.b16 %v1366
    %v1522 = vunpack.c.l.b16 %v1367
    %v1523 = vunpack.c.h.b16 %v1367
    %v1524 = vunpack.c.l.b16 %v1368
    %v1525 = vunpack.c.h.b16 %v1368
    %v1526 = vunpack.c.l.b16 %v1369
    %v1527 = vunpack.c.h.b16 %v1369
    %v1528 = vunpack.c.l.b16 %v1370
    %v1529 = vunpack.c.h.b16 %v1370
    %v1530 = vunpack.c.l.b16 %v1371
    %v1531 = vunpack.c.h.b16 %v1371
    %v1532 = vunpack.c.l.b16 %v1372
    %v1533 = vunpack.c.h.b16 %v1372
    %v1534 = vunpack.c.l.b16 %v1373
    %v1535 = vunpack.c.h.b16 %v1373
    %v1536 = vunpack.c.l.b16 %v1374
    %v1537 = vunpack.c.h.b16 %v1374
    %v1538 = vunpack.c.l.b16 %v1375
    %v1539 = vunpack.c.h.b16 %v1375
    %v1540 = vunpack.c.l.b16 %v1376
    %v1541 = vunpack.c.h.b16 %v1376
    %v1542 = vunpack.c.l.b16 %v1377
    %v1543 = vunpack.c.h.b16 %v1377
    %v1544 = vunpack.c.l.b16 %v1378
    %v1545 = vunpack.c.h.b16 %v1378
    %v1546 = vunpack.c.l.b16 %v1379
    %v1547 = vunpack.c.h.b16 %v1379
    %v1548 = vunpack.c.l.b16 %v1380
    %v1549 = vunpack.c.h.b16 %v1380
    %v1550 = vunpack.c.l.b16 %v1381
    %v1551 = vunpack.c.h.b16 %v1381
    %v1552 = vunpack.c.l.b16 %v1382
    %v1553 = vunpack.c.h.b16 %v1382
    %v1554 = vunpack.c.l.b16 %v1383
    %v1555 = vunpack.c.h.b16 %v1383
    %v1556 = vunpack.c.l.b16 %v1384
    %v1557 = vunpack.c.h.b16 %v1384
    %v1558 = vunpack.c.l.b16 %v1385
    %v1559 = vunpack.c.h.b16 %v1385
    %v1560 = vunpack.c.l.b16 %v1386
    %v1561 = vunpack.c.h.b16 %v1386
    %v1562 = vunpack.c.l.b16 %v1387
    %v1563 = vunpack.c.h.b16 %v1387
    %v1564 = vunpack.c.l.b16 %v1388
    %v1565 = vunpack.c.h.b16 %v1388
    %v1566 = vunpack.c.l.b16 %v1389
    %v1567 = vunpack.c.h.b16 %v1389
    %v1568 = vunpack.c.l.b16 %v1390
    %v1569 = vunpack.c.h.b16 %v1390
    %v1570 = vunpack.c.l.b16 %v1391
    %v1571 = vunpack.c.h.b16 %v1391
    %v1572 = vunpack.c.l.b16 %v1392
    %v1573 = vunpack.c.h.b16 %v1392
    %v1574 = vunpack.c.l.b16 %v1393
    %v1575 = vunpack.c.h.b16 %v1393
    %v1576 = vunpack.c.l.b16 %v1394
    %v1577 = vunpack.c.h.b16 %v1394
    %v1578 = vunpack.c.l.b16 %v1395
    %v1579 = vunpack.c.h.b16 %v1395
    %v1580 = vunpack.c.l.b16 %v1396
    %v1581 = vunpack.c.h.b16 %v1396
    %v1582 = vunpack.c.l.b16 %v1397
    %v1583 = vunpack.c.h.b16 %v1397
    %v1584 = vunpack.c.l.b16 %v1398
    %v1585 = vunpack.c.h.b16 %v1398
    %v1586 = vunpack.c.l.b16 %v1399
    %v1587 = vunpack.c.h.b16 %v1399
    %v1588 = vunpack.c.l.b16 %v1400
    %v1589 = vunpack.c.h.b16 %v1400
    %v1590 = vunpack.c.l.b16 %v1401
    %v1591 = vunpack.c.h.b16 %v1401
    %v1592 = vunpack.c.l.b16 %v1402
    %v1593 = vunpack.c.h.b16 %v1402
    %v1594 = vunpack.c.l.b16 %v1403
    %v1595 = vunpack.c.h.b16 %v1403
    %v1596 = vunpack.c.l.b16 %v1404
    %v1597 = vunpack.c.h.b16 %v1404
    %v1598 = vunpack.c.l.b16 %v1405
    %v1599 = vunpack.c.h.b16 %v1405
    %v1600 = vunpack.c.l.b16 %v1406
    %v1601 = vunpack.c.h.b16 %v1406
    %v1602 = vunpack.c.l.b16 %v1407
    %v1603 = vunpack.c.h.b16 %v1407
    %v1604 = vunpack.c.l.b16 %v1408
    %v1605 = vunpack.c.h.b16 %v1408
    %v1606 = vunpack.c.l.b16 %v1409
    %v1607 = vunpack.c.h.b16 %v1409
    %v1608 = vunpack.c.l.b16 %v1410
    %v1609 = vunpack.c.h.b16 %v1410
    %v1610 = vunpack.c.l.b16 %v1411
    %v1611 = vunpack.c.h.b16 %v1411
    %v1612 = vunpack.c.l.b16 %v1412
    %v1613 = vunpack.c.h.b16 %v1412
    %v1614 = vunpack.c.l.b16 %v1413
    %v1615 = vunpack.c.h.b16 %v1413
    %v1616 = vunpack.c.l.b16 %v1414
    %v1617 = vunpack.c.h.b16 %v1414
    %v1618 = vunpack.c.l.b16 %v1415
    %v1619 = vunpack.c.h.b16 %v1415
    %v1620 = vpack.c.b16 %v1494, %v1492
    %v1621 = vpack.c.b16 %v1495, %v1493
    %v1622 = vpack.c.b16 %v1498, %v1496
    %v1623 = vpack.c.b16 %v1499, %v1497
    %v1624 = vpack.c.b16 %v1502, %v1500
    %v1625 = vpack.c.b16 %v1503, %v1501
    %v1626 = vpack.c.b16 %v1506, %v1504
    %v1627 = vpack.c.b16 %v1507, %v1505
    %v1628 = vpack.c.b16 %v1510, %v1508
    %v1629 = vpack.c.b16 %v1511, %v1509
    %v1630 = vpack.c.b16 %v1514, %v1512
    %v1631 = vpack.c.b16 %v1515, %v1513
    %v1632 = vpack.c.b16 %v1518, %v1516
    %v1633 = vpack.c.b16 %v1519, %v1517
    %v1634 = vpack.c.b16 %v1522, %v1520
    %v1635 = vpack.c.b16 %v1523, %v1521
    %v1636 = vpack.c.b16 %v1526, %v1524
    %v1637 = vpack.c.b16 %v1527, %v1525
    %v1638 = vpack.c.b16 %v1530, %v1528
    %v1639 = vpack.c.b16 %v1531, %v1529
    %v1640 = vpack.c.b16 %v1534, %v1532
    %v1641 = vpack.c.b16 %v1535, %v1533
    %v1642 = vpack.c.b16 %v1538, %v1536
    %v1643 = vpack.c.b16 %v1539, %v1537
    %v1644 = vpack.c.b16 %v1542, %v1540
    %v1645 = vpack.c.b16 %v1543, %v1541
    %v1646 = vpack.c.b16 %v1546, %v1544
    %v1647 = vpack.c.b16 %v1547, %v1545
    %v1648 = vpack.c.b16 %v1550, %v1548
    %v1649 = vpack.c.b16 %v1551, %v1549
    %v1650 = vpack.c.b16 %v1554, %v1552
    %v1651 = vpack.c.b16 %v1555, %v1553
    %v1652 = vpack.c.b16 %v1558, %v1556
    %v1653 = vpack.c.b16 %v1559, %v1557
    %v1654 = vpack.c.b16 %v1562, %v1560
    %v1655 = vpack.c.b16 %v1563, %v1561
    %v1656 = vpack.c.b16 %v1566, %v1564
    %v1657 = vpack.c.b16 %v1567, %v1565
    %v1658 = vpack.c.b16 %v1570, %v1568
    %v1659 = vpack.c.b16 %v1571, %v1569
    %v1660 = vpack.c.b16 %v1574, %v1572
    %v1661 = vpack.c.b16 %v1575, %v1573
    %v1662 = vpack.c.b16 %v1578, %v1576
    %v1663 = vpack.c.b16 %v1579, %v1577
    %v1664 = vpack.c.b16 %v1582, %v1580
    %v1665 = vpack.c.b16 %v1583, %v1581
    %v1666 = vpack.c.b16 %v1586, %v1584
    %v1667 = vpack.c.b16 %v1587, %v1585
    %v1668 = vpack.c.b16 %v1590, %v1588
    %v1669 = vpack.c.b16 %v1591, %v1589
    %v1670 = vpack.c.b16 %v1594, %v1592
    %v1671 = vpack.c.b16 %v1595, %v1593
    %v1672 = vpack.c.b16 %v1598, %v1596
    %v1673 = vpack.c.b16 %v1599, %v1597
    %v1674 = vpack.c.b16 %v1602, %v1600
    %v1675 = vpack.c.b16 %v1603, %v1601
    %v1676 = vpack.c.b16 %v1606, %v1604
    %v1677 = vpack.c.b16 %v1607, %v1605
    %v1678 = vpack.c.b16 %v1610, %v1608
    %v1679 = vpack.c.b16 %v1611, %v1609
    %v1680 = vpack.c.b16 %v1614, %v1612
    %v1681 = vpack.c.b16 %v1615, %v1613
    %v1682 = vpack.c.b16 %v1618, %v1616
    %v1683 = vpack.c.b16 %v1619, %v1617
    %1748 = vmatprep.subr.bf16.mxu0 %v1621
    %1749 = vmatpush1.bf16.msra.mxu0 %v1620
    %1750 = vmatprep.subr.bf16.mxu0 %v1623
    %1751 = vmatpush1.bf16.msra.mxu0 %v1622
    %1752 = vmatprep.subr.bf16.mxu0 %v1625
    %1753 = vmatpush1.bf16.msra.mxu0 %v1624
    %1754 = vmatprep.subr.bf16.mxu0 %v1627
    %1755 = vmatpush1.bf16.msra.mxu0 %v1626
    %1756 = vmatprep.subr.bf16.mxu0 %v1629
    %1757 = vmatpush1.bf16.msra.mxu0 %v1628
    %1758 = vmatprep.subr.bf16.mxu0 %v1631
    %1759 = vmatpush1.bf16.msra.mxu0 %v1630
    %1760 = vmatprep.subr.bf16.mxu0 %v1633
    %1761 = vmatpush1.bf16.msra.mxu0 %v1632
    %1762 = vmatprep.subr.bf16.mxu0 %v1635
    %1763 = vmatpush1.bf16.msra.mxu0 %v1634
    %1764 = vmatprep.subr.bf16.mxu0 %v1637
    %1765 = vmatpush1.bf16.msra.mxu0 %v1636
    %1766 = vmatprep.subr.bf16.mxu0 %v1639
    %1767 = vmatpush1.bf16.msra.mxu0 %v1638
    %1768 = vmatprep.subr.bf16.mxu0 %v1641
    %1769 = vmatpush1.bf16.msra.mxu0 %v1640
    %1770 = vmatprep.subr.bf16.mxu0 %v1643
    %1771 = vmatpush1.bf16.msra.mxu0 %v1642
    %1772 = vmatprep.subr.bf16.mxu0 %v1645
    %1773 = vmatpush1.bf16.msra.mxu0 %v1644
    %1774 = vmatprep.subr.bf16.mxu0 %v1647
    %1775 = vmatpush1.bf16.msra.mxu0 %v1646
    %1776 = vmatprep.subr.bf16.mxu0 %v1649
    %1777 = vmatpush1.bf16.msra.mxu0 %v1648
    %1778 = vmatprep.subr.bf16.mxu0 %v1651
    %1779 = vmatpush1.bf16.msra.mxu0 %v1650
    %1780 = vmatprep.mubr.bf16.mxu0 %v1289
    %1781 = vmatmul.mubr.bf16.gmra.mrb[0].mxu0 %v1288
    %v1782 = vpop.f32.mrb[0].mxu0
    %v1783 = vadd.f32 %v1421, %v1782
    %v1784 = vpop.f32.mrb[0].mxu0
    %v1785 = vadd.f32 %v1425, %v1784
    %v1786 = vpop.f32.mrb[0].mxu0
    %v1787 = vadd.f32 %v1421, %v1786
    %v1788 = vpop.f32.mrb[0].mxu0
    %v1789 = vadd.f32 %v1425, %v1788
    %1790 = vmatprep.mubr.bf16.mxu0 %v1293
    %1791 = vmatmul.mubr.bf16.gmra.mrb[0].mxu0 %v1292
    %v1792 = vpop.f32.mrb[0].mxu0
    %v1793 = vadd.f32 %v1421, %v1792
    %v1794 = vpop.f32.mrb[0].mxu0
    %v1795 = vadd.f32 %v1425, %v1794
    %v1796 = vpop.f32.mrb[0].mxu0
    %v1797 = vadd.f32 %v1421, %v1796
    %v1798 = vpop.f32.mrb[0].mxu0
    %v1799 = vadd.f32 %v1425, %v1798
    %1800 = vmatprep.mubr.bf16.mxu0 %v1297
    %1801 = vmatmul.mubr.bf16.gmra.mrb[0].mxu0 %v1296
    %v1802 = vpop.f32.mrb[0].mxu0
    %v1803 = vadd.f32 %v1421, %v1802
    %v1804 = vpop.f32.mrb[0].mxu0
    %v1805 = vadd.f32 %v1425, %v1804
    %v1806 = vpop.f32.mrb[0].mxu0
    %v1807 = vadd.f32 %v1421, %v1806
    %v1808 = vpop.f32.mrb[0].mxu0
    %v1809 = vadd.f32 %v1425, %v1808
    %1810 = vmatprep.mubr.bf16.mxu0 %v1301
    %1811 = vmatmul.mubr.bf16.gmra.mrb[0].mxu0 %v1300
    %v1812 = vpop.f32.mrb[0].mxu0
    %v1813 = vadd.f32 %v1421, %v1812
    %v1814 = vpop.f32.mrb[0].mxu0
    %v1815 = vadd.f32 %v1425, %v1814
    %v1816 = vpop.f32.mrb[0].mxu0
    %v1817 = vadd.f32 %v1421, %v1816
    %v1818 = vpop.f32.mrb[0].mxu0
    %v1819 = vadd.f32 %v1425, %v1818
    %1820 = vmatprep.mubr.bf16.mxu0 %v1305
    %1821 = vmatmul.mubr.bf16.gmra.mrb[0].mxu0 %v1304
    %v1822 = vpop.f32.mrb[0].mxu0
    %v1823 = vadd.f32 %v1421, %v1822
    %v1824 = vpop.f32.mrb[0].mxu0
    %v1825 = vadd.f32 %v1425, %v1824
    %v1826 = vpop.f32.mrb[0].mxu0
    %v1827 = vadd.f32 %v1421, %v1826
    %v1828 = vpop.f32.mrb[0].mxu0
    %v1829 = vadd.f32 %v1425, %v1828
    %1830 = vmatprep.mubr.bf16.mxu0 %v1309
    %1831 = vmatmul.mubr.bf16.gmra.mrb[0].mxu0 %v1308
    %v1832 = vpop.f32.mrb[0].mxu0
    %v1833 = vadd.f32 %v1421, %v1832
    %v1834 = vpop.f32.mrb[0].mxu0
    %v1835 = vadd.f32 %v1425, %v1834
    %v1836 = vpop.f32.mrb[0].mxu0
    %v1837 = vadd.f32 %v1421, %v1836
    %v1838 = vpop.f32.mrb[0].mxu0
    %v1839 = vadd.f32 %v1425, %v1838
    %1840 = vmatprep.mubr.bf16.mxu0 %v1313
    %1841 = vmatmul.mubr.bf16.gmra.mrb[0].mxu0 %v1312
    %v1842 = vpop.f32.mrb[0].mxu0
    %v1843 = vadd.f32 %v1421, %v1842
    %v1844 = vpop.f32.mrb[0].mxu0
    %v1845 = vadd.f32 %v1425, %v1844
    %v1846 = vpop.f32.mrb[0].mxu0
    %v1847 = vadd.f32 %v1421, %v1846
    %v1848 = vpop.f32.mrb[0].mxu0
    %v1849 = vadd.f32 %v1425, %v1848
    %1850 = vmatprep.mubr.bf16.mxu0 %v1317
    %1851 = vmatmul.mubr.bf16.gmra.mrb[0].mxu0 %v1316
    %v1852 = vpop.f32.mrb[0].mxu0
    %v1853 = vadd.f32 %v1421, %v1852
    %v1854 = vpop.f32.mrb[0].mxu0
    %v1855 = vadd.f32 %v1425, %v1854
    %v1856 = vpop.f32.mrb[0].mxu0
    %v1857 = vadd.f32 %v1421, %v1856
    %v1858 = vpop.f32.mrb[0].mxu0
    %v1859 = vadd.f32 %v1425, %v1858
    %1860 = vmatprep.mubr.bf16.mxu0 %v1321
    %1861 = vmatmul.mubr.bf16.gmra.mrb[0].mxu0 %v1320
    %v1862 = vpop.f32.mrb[0].mxu0
    %v1863 = vadd.f32 %v1421, %v1862
    %v1864 = vpop.f32.mrb[0].mxu0
    %v1865 = vadd.f32 %v1425, %v1864
    %v1866 = vpop.f32.mrb[0].mxu0
    %v1867 = vadd.f32 %v1421, %v1866
    %v1868 = vpop.f32.mrb[0].mxu0
    %v1869 = vadd.f32 %v1425, %v1868
    %1870 = vmatprep.mubr.bf16.mxu0 %v1325
    %1871 = vmatmul.mubr.bf16.gmra.mrb[0].mxu0 %v1324
    %v1872 = vpop.f32.mrb[0].mxu0
    %v1873 = vadd.f32 %v1421, %v1872
    %v1874 = vpop.f32.mrb[0].mxu0
    %v1875 = vadd.f32 %v1425, %v1874
    %v1876 = vpop.f32.mrb[0].mxu0
    %v1877 = vadd.f32 %v1421, %v1876
    %v1878 = vpop.f32.mrb[0].mxu0
    %v1879 = vadd.f32 %v1425, %v1878
    %1880 = vmatprep.mubr.bf16.mxu0 %v1329
    %1881 = vmatmul.mubr.bf16.gmra.mrb[0].mxu0 %v1328
    %v1882 = vpop.f32.mrb[0].mxu0
    %v1883 = vadd.f32 %v1421, %v1882
    %v1884 = vpop.f32.mrb[0].mxu0
    %v1885 = vadd.f32 %v1425, %v1884
    %v1886 = vpop.f32.mrb[0].mxu0
    %v1887 = vadd.f32 %v1421, %v1886
    %v1888 = vpop.f32.mrb[0].mxu0
    %v1889 = vadd.f32 %v1425, %v1888
    %1890 = vmatprep.mubr.bf16.mxu0 %v1333
    %1891 = vmatmul.mubr.bf16.gmra.mrb[0].mxu0 %v1332
    %v1892 = vpop.f32.mrb[0].mxu0
    %v1893 = vadd.f32 %v1421, %v1892
    %v1894 = vpop.f32.mrb[0].mxu0
    %v1895 = vadd.f32 %v1425, %v1894
    %v1896 = vpop.f32.mrb[0].mxu0
    %v1897 = vadd.f32 %v1421, %v1896
    %v1898 = vpop.f32.mrb[0].mxu0
    %v1899 = vadd.f32 %v1425, %v1898
    %1900 = vmatprep.mubr.bf16.mxu0 %v1337
    %1901 = vmatmul.mubr.bf16.gmra.mrb[0].mxu0 %v1336
    %v1902 = vpop.f32.mrb[0].mxu0
    %v1903 = vadd.f32 %v1421, %v1902
    %v1904 = vpop.f32.mrb[0].mxu0
    %v1905 = vadd.f32 %v1425, %v1904
    %v1906 = vpop.f32.mrb[0].mxu0
    %v1907 = vadd.f32 %v1421, %v1906
    %v1908 = vpop.f32.mrb[0].mxu0
    %v1909 = vadd.f32 %v1425, %v1908
    %1910 = vmatprep.mubr.bf16.mxu0 %v1341
    %1911 = vmatmul.mubr.bf16.gmra.mrb[0].mxu0 %v1340
    %v1912 = vpop.f32.mrb[0].mxu0
    %v1913 = vadd.f32 %v1421, %v1912
    %v1914 = vpop.f32.mrb[0].mxu0
    %v1915 = vadd.f32 %v1425, %v1914
    %v1916 = vpop.f32.mrb[0].mxu0
    %v1917 = vadd.f32 %v1421, %v1916
    %v1918 = vpop.f32.mrb[0].mxu0
    %v1919 = vadd.f32 %v1425, %v1918
    %1920 = vmatprep.mubr.bf16.mxu0 %v1345
    %1921 = vmatmul.mubr.bf16.gmra.mrb[0].mxu0 %v1344
    %v1922 = vpop.f32.mrb[0].mxu0
    %v1923 = vadd.f32 %v1421, %v1922
    %v1924 = vpop.f32.mrb[0].mxu0
    %v1925 = vadd.f32 %v1425, %v1924
    %v1926 = vpop.f32.mrb[0].mxu0
    %v1927 = vadd.f32 %v1421, %v1926
    %v1928 = vpop.f32.mrb[0].mxu0
    %v1929 = vadd.f32 %v1425, %v1928
    %1930 = vmatprep.mubr.bf16.mxu0 %v1349
    %1931 = vmatmul.mubr.bf16.gmra.mrb[0].mxu0 %v1348
    %v1932 = vpop.f32.mrb[0].mxu0
    %v1933 = vadd.f32 %v1421, %v1932
    %v1934 = vpop.f32.mrb[0].mxu0
    %v1935 = vadd.f32 %v1425, %v1934
    %v1936 = vpop.f32.mrb[0].mxu0
    %v1937 = vadd.f32 %v1421, %v1936
    %v1938 = vpop.f32.mrb[0].mxu0
    %v1939 = vadd.f32 %v1425, %v1938
    %1940 = vdwg.mxu0
    %1941 = vmatprep.subr.bf16.mxu0 %v1653
    %1942 = vmatpush1.bf16.msra.mxu0 %v1652
    %1943 = vmatprep.subr.bf16.mxu0 %v1655
    %1944 = vmatpush1.bf16.msra.mxu0 %v1654
    %1945 = vmatprep.subr.bf16.mxu0 %v1657
    %1946 = vmatpush1.bf16.msra.mxu0 %v1656
    %1947 = vmatprep.subr.bf16.mxu0 %v1659
    %1948 = vmatpush1.bf16.msra.mxu0 %v1658
    %1949 = vmatprep.subr.bf16.mxu0 %v1661
    %1950 = vmatpush1.bf16.msra.mxu0 %v1660
    %1951 = vmatprep.subr.bf16.mxu0 %v1663
    %1952 = vmatpush1.bf16.msra.mxu0 %v1662
    %1953 = vmatprep.subr.bf16.mxu0 %v1665
    %1954 = vmatpush1.bf16.msra.mxu0 %v1664
    %1955 = vmatprep.subr.bf16.mxu0 %v1667
    %1956 = vmatpush1.bf16.msra.mxu0 %v1666
    %1957 = vmatprep.subr.bf16.mxu0 %v1669
    %1958 = vmatpush1.bf16.msra.mxu0 %v1668
    %1959 = vmatprep.subr.bf16.mxu0 %v1671
    %1960 = vmatpush1.bf16.msra.mxu0 %v1670
    %1961 = vmatprep.subr.bf16.mxu0 %v1673
    %1962 = vmatpush1.bf16.msra.mxu0 %v1672
    %1963 = vmatprep.subr.bf16.mxu0 %v1675
    %1964 = vmatpush1.bf16.msra.mxu0 %v1674
    %1965 = vmatprep.subr.bf16.mxu0 %v1677
    %1966 = vmatpush1.bf16.msra.mxu0 %v1676
    %1967 = vmatprep.subr.bf16.mxu0 %v1679
    %1968 = vmatpush1.bf16.msra.mxu0 %v1678
    %1969 = vmatprep.subr.bf16.mxu0 %v1681
    %1970 = vmatpush1.bf16.msra.mxu0 %v1680
    %1971 = vmatprep.subr.bf16.mxu0 %v1683
    %1972 = vmatpush1.bf16.msra.mxu0 %v1682
    %1973 = vmatprep.mubr.bf16.mxu0 %v1291
    %1974 = vmatmul.mubr.bf16.gmra.mrb[0].mxu0 %v1290
    %v1975 = vpop.f32.mrb[0].mxu0
    %v1976 = vadd.f32 %v1783, %v1975
    %v1977 = vpop.f32.mrb[0].mxu0
    %v1978 = vadd.f32 %v1785, %v1977
    %v1979 = vpop.f32.mrb[0].mxu0
    %v1980 = vadd.f32 %v1787, %v1979
    %v1981 = vpop.f32.mrb[0].mxu0
    %v1982 = vadd.f32 %v1789, %v1981
    %1983 = vmatprep.mubr.bf16.mxu0 %v1295
    %1984 = vmatmul.mubr.bf16.gmra.mrb[0].mxu0 %v1294
    %v1985 = vpop.f32.mrb[0].mxu0
    %v1986 = vadd.f32 %v1793, %v1985
    %v1987 = vpop.f32.mrb[0].mxu0
    %v1988 = vadd.f32 %v1795, %v1987
    %v1989 = vpop.f32.mrb[0].mxu0
    %v1990 = vadd.f32 %v1797, %v1989
    %v1991 = vpop.f32.mrb[0].mxu0
    %v1992 = vadd.f32 %v1799, %v1991
    %1993 = vmatprep.mubr.bf16.mxu0 %v1299
    %1994 = vmatmul.mubr.bf16.gmra.mrb[0].mxu0 %v1298
    %v1995 = vpop.f32.mrb[0].mxu0
    %v1996 = vadd.f32 %v1803, %v1995
    %v1997 = vpop.f32.mrb[0].mxu0
    %v1998 = vadd.f32 %v1805, %v1997
    %v1999 = vpop.f32.mrb[0].mxu0
    %v2000 = vadd.f32 %v1807, %v1999
    %v2001 = vpop.f32.mrb[0].mxu0
    %v2002 = vadd.f32 %v1809, %v2001
    %2003 = vmatprep.mubr.bf16.mxu0 %v1303
    %2004 = vmatmul.mubr.bf16.gmra.mrb[0].mxu0 %v1302
    %v2005 = vpop.f32.mrb[0].mxu0
    %v2006 = vadd.f32 %v1813, %v2005
    %v2007 = vpop.f32.mrb[0].mxu0
    %v2008 = vadd.f32 %v1815, %v2007
    %v2009 = vpop.f32.mrb[0].mxu0
    %v2010 = vadd.f32 %v1817, %v2009
    %v2011 = vpop.f32.mrb[0].mxu0
    %v2012 = vadd.f32 %v1819, %v2011
    %2013 = vmatprep.mubr.bf16.mxu0 %v1307
    %2014 = vmatmul.mubr.bf16.gmra.mrb[0].mxu0 %v1306
    %v2015 = vpop.f32.mrb[0].mxu0
    %v2016 = vadd.f32 %v1823, %v2015
    %v2017 = vpop.f32.mrb[0].mxu0
    %v2018 = vadd.f32 %v1825, %v2017
    %v2019 = vpop.f32.mrb[0].mxu0
    %v2020 = vadd.f32 %v1827, %v2019
    %v2021 = vpop.f32.mrb[0].mxu0
    %v2022 = vadd.f32 %v1829, %v2021
    %2023 = vmatprep.mubr.bf16.mxu0 %v1311
    %2024 = vmatmul.mubr.bf16.gmra.mrb[0].mxu0 %v1310
    %v2025 = vpop.f32.mrb[0].mxu0
    %v2026 = vadd.f32 %v1833, %v2025
    %v2027 = vpop.f32.mrb[0].mxu0
    %v2028 = vadd.f32 %v1835, %v2027
    %v2029 = vpop.f32.mrb[0].mxu0
    %v2030 = vadd.f32 %v1837, %v2029
    %v2031 = vpop.f32.mrb[0].mxu0
    %v2032 = vadd.f32 %v1839, %v2031
    %2033 = vmatprep.mubr.bf16.mxu0 %v1315
    %2034 = vmatmul.mubr.bf16.gmra.mrb[0].mxu0 %v1314
    %v2035 = vpop.f32.mrb[0].mxu0
    %v2036 = vadd.f32 %v1843, %v2035
    %v2037 = vpop.f32.mrb[0].mxu0
    %v2038 = vadd.f32 %v1845, %v2037
    %v2039 = vpop.f32.mrb[0].mxu0
    %v2040 = vadd.f32 %v1847, %v2039
    %v2041 = vpop.f32.mrb[0].mxu0
    %v2042 = vadd.f32 %v1849, %v2041
    %2043 = vmatprep.mubr.bf16.mxu0 %v1319
    %2044 = vmatmul.mubr.bf16.gmra.mrb[0].mxu0 %v1318
    %v2045 = vpop.f32.mrb[0].mxu0
    %v2046 = vadd.f32 %v1853, %v2045
    %v2047 = vpop.f32.mrb[0].mxu0
    %v2048 = vadd.f32 %v1855, %v2047
    %v2049 = vpop.f32.mrb[0].mxu0
    %v2050 = vadd.f32 %v1857, %v2049
    %v2051 = vpop.f32.mrb[0].mxu0
    %v2052 = vadd.f32 %v1859, %v2051
    %2053 = vmatprep.mubr.bf16.mxu0 %v1323
    %2054 = vmatmul.mubr.bf16.gmra.mrb[0].mxu0 %v1322
    %v2055 = vpop.f32.mrb[0].mxu0
    %v2056 = vadd.f32 %v1863, %v2055
    %v2057 = vpop.f32.mrb[0].mxu0
    %v2058 = vadd.f32 %v1865, %v2057
    %v2059 = vpop.f32.mrb[0].mxu0
    %v2060 = vadd.f32 %v1867, %v2059
    %v2061 = vpop.f32.mrb[0].mxu0
    %v2062 = vadd.f32 %v1869, %v2061
    %2063 = vmatprep.mubr.bf16.mxu0 %v1327
    %2064 = vmatmul.mubr.bf16.gmra.mrb[0].mxu0 %v1326
    %v2065 = vpop.f32.mrb[0].mxu0
    %v2066 = vadd.f32 %v1873, %v2065
    %v2067 = vpop.f32.mrb[0].mxu0
    %v2068 = vadd.f32 %v1875, %v2067
    %v2069 = vpop.f32.mrb[0].mxu0
    %v2070 = vadd.f32 %v1877, %v2069
    %v2071 = vpop.f32.mrb[0].mxu0
    %v2072 = vadd.f32 %v1879, %v2071
    %2073 = vmatprep.mubr.bf16.mxu0 %v1331
    %2074 = vmatmul.mubr.bf16.gmra.mrb[0].mxu0 %v1330
    %v2075 = vpop.f32.mrb[0].mxu0
    %v2076 = vadd.f32 %v1883, %v2075
    %v2077 = vpop.f32.mrb[0].mxu0
    %v2078 = vadd.f32 %v1885, %v2077
    %v2079 = vpop.f32.mrb[0].mxu0
    %v2080 = vadd.f32 %v1887, %v2079
    %v2081 = vpop.f32.mrb[0].mxu0
    %v2082 = vadd.f32 %v1889, %v2081
    %2083 = vmatprep.mubr.bf16.mxu0 %v1335
    %2084 = vmatmul.mubr.bf16.gmra.mrb[0].mxu0 %v1334
    %v2085 = vpop.f32.mrb[0].mxu0
    %v2086 = vadd.f32 %v1893, %v2085
    %v2087 = vpop.f32.mrb[0].mxu0
    %v2088 = vadd.f32 %v1895, %v2087
    %v2089 = vpop.f32.mrb[0].mxu0
    %v2090 = vadd.f32 %v1897, %v2089
    %v2091 = vpop.f32.mrb[0].mxu0
    %v2092 = vadd.f32 %v1899, %v2091
    %2093 = vmatprep.mubr.bf16.mxu0 %v1339
    %2094 = vmatmul.mubr.bf16.gmra.mrb[0].mxu0 %v1338
    %v2095 = vpop.f32.mrb[0].mxu0
    %v2096 = vadd.f32 %v1903, %v2095
    %v2097 = vpop.f32.mrb[0].mxu0
    %v2098 = vadd.f32 %v1905, %v2097
    %v2099 = vpop.f32.mrb[0].mxu0
    %v2100 = vadd.f32 %v1907, %v2099
    %v2101 = vpop.f32.mrb[0].mxu0
    %v2102 = vadd.f32 %v1909, %v2101
    %2103 = vmatprep.mubr.bf16.mxu0 %v1343
    %2104 = vmatmul.mubr.bf16.gmra.mrb[0].mxu0 %v1342
    %v2105 = vpop.f32.mrb[0].mxu0
    %v2106 = vadd.f32 %v1913, %v2105
    %v2107 = vpop.f32.mrb[0].mxu0
    %v2108 = vadd.f32 %v1915, %v2107
    %v2109 = vpop.f32.mrb[0].mxu0
    %v2110 = vadd.f32 %v1917, %v2109
    %v2111 = vpop.f32.mrb[0].mxu0
    %v2112 = vadd.f32 %v1919, %v2111
    %2113 = vmatprep.mubr.bf16.mxu0 %v1347
    %2114 = vmatmul.mubr.bf16.gmra.mrb[0].mxu0 %v1346
    %v2115 = vpop.f32.mrb[0].mxu0
    %v2116 = vadd.f32 %v1923, %v2115
    %v2117 = vpop.f32.mrb[0].mxu0
    %v2118 = vadd.f32 %v1925, %v2117
    %v2119 = vpop.f32.mrb[0].mxu0
    %v2120 = vadd.f32 %v1927, %v2119
    %v2121 = vpop.f32.mrb[0].mxu0
    %v2122 = vadd.f32 %v1929, %v2121
    %2123 = vmatprep.mubr.bf16.mxu0 %v1351
    %2124 = vmatmul.mubr.bf16.gmra.mrb[0].mxu0 %v1350
    %v2125 = vpop.f32.mrb[0].mxu0
    %v2126 = vadd.f32 %v1933, %v2125
    %v2127 = vpop.f32.mrb[0].mxu0
    %v2128 = vadd.f32 %v1935, %v2127
    %v2129 = vpop.f32.mrb[0].mxu0
    %v2130 = vadd.f32 %v1937, %v2129
    %v2131 = vpop.f32.mrb[0].mxu0
    %v2132 = vadd.f32 %v1939, %v2131
    %2133 = vdwg.mxu0
    %vm2134 = vcmp.ge.f32.partialorder %v1976, 0.0
    %vm2135 = vcmp.ge.f32.partialorder %v1978, 0.0
    %vm2136 = vcmp.ge.f32.partialorder %v1980, 0.0
    %vm2137 = vcmp.ge.f32.partialorder %v1982, 0.0
    %vm2138 = vcmp.ge.f32.partialorder %v1986, 0.0
    %vm2139 = vcmp.ge.f32.partialorder %v1988, 0.0
    %vm2140 = vcmp.ge.f32.partialorder %v1990, 0.0
    %vm2141 = vcmp.ge.f32.partialorder %v1992, 0.0
    %vm2142 = vcmp.ge.f32.partialorder %v1996, 0.0
    %vm2143 = vcmp.ge.f32.partialorder %v1998, 0.0
    %vm2144 = vcmp.ge.f32.partialorder %v2000, 0.0
    %vm2145 = vcmp.ge.f32.partialorder %v2002, 0.0
    %vm2146 = vcmp.ge.f32.partialorder %v2006, 0.0
    %vm2147 = vcmp.ge.f32.partialorder %v2008, 0.0
    %vm2148 = vcmp.ge.f32.partialorder %v2010, 0.0
    %vm2149 = vcmp.ge.f32.partialorder %v2012, 0.0
    %vm2150 = vcmp.ge.f32.partialorder %v2016, 0.0
    %vm2151 = vcmp.ge.f32.partialorder %v2018, 0.0
    %vm2152 = vcmp.ge.f32.partialorder %v2020, 0.0
    %vm2153 = vcmp.ge.f32.partialorder %v2022, 0.0
    %vm2154 = vcmp.ge.f32.partialorder %v2026, 0.0
    %vm2155 = vcmp.ge.f32.partialorder %v2028, 0.0
    %vm2156 = vcmp.ge.f32.partialorder %v2030, 0.0
    %vm2157 = vcmp.ge.f32.partialorder %v2032, 0.0
    %vm2158 = vcmp.ge.f32.partialorder %v2036, 0.0
    %vm2159 = vcmp.ge.f32.partialorder %v2038, 0.0
    %vm2160 = vcmp.ge.f32.partialorder %v2040, 0.0
    %vm2161 = vcmp.ge.f32.partialorder %v2042, 0.0
    %vm2162 = vcmp.ge.f32.partialorder %v2046, 0.0
    %vm2163 = vcmp.ge.f32.partialorder %v2048, 0.0
    %vm2164 = vcmp.ge.f32.partialorder %v2050, 0.0
    %vm2165 = vcmp.ge.f32.partialorder %v2052, 0.0
    %vm2166 = vcmp.ge.f32.partialorder %v2056, 0.0
    %vm2167 = vcmp.ge.f32.partialorder %v2058, 0.0
    %vm2168 = vcmp.ge.f32.partialorder %v2060, 0.0
    %vm2169 = vcmp.ge.f32.partialorder %v2062, 0.0
    %vm2170 = vcmp.ge.f32.partialorder %v2066, 0.0
    %vm2171 = vcmp.ge.f32.partialorder %v2068, 0.0
    %vm2172 = vcmp.ge.f32.partialorder %v2070, 0.0
    %vm2173 = vcmp.ge.f32.partialorder %v2072, 0.0
    %vm2174 = vcmp.ge.f32.partialorder %v2076, 0.0
    %vm2175 = vcmp.ge.f32.partialorder %v2078, 0.0
    %vm2176 = vcmp.ge.f32.partialorder %v2080, 0.0
    %vm2177 = vcmp.ge.f32.partialorder %v2082, 0.0
    %vm2178 = vcmp.ge.f32.partialorder %v2086, 0.0
    %vm2179 = vcmp.ge.f32.partialorder %v2088, 0.0
    %vm2180 = vcmp.ge.f32.partialorder %v2090, 0.0
    %vm2181 = vcmp.ge.f32.partialorder %v2092, 0.0
    %vm2182 = vcmp.ge.f32.partialorder %v2096, 0.0
    %vm2183 = vcmp.ge.f32.partialorder %v2098, 0.0
    %vm2184 = vcmp.ge.f32.partialorder %v2100, 0.0
    %vm2185 = vcmp.ge.f32.partialorder %v2102, 0.0
    %vm2186 = vcmp.ge.f32.partialorder %v2106, 0.0
    %vm2187 = vcmp.ge.f32.partialorder %v2108, 0.0
    %vm2188 = vcmp.ge.f32.partialorder %v2110, 0.0
    %vm2189 = vcmp.ge.f32.partialorder %v2112, 0.0
    %vm2190 = vcmp.ge.f32.partialorder %v2116, 0.0
    %vm2191 = vcmp.ge.f32.partialorder %v2118, 0.0
    %vm2192 = vcmp.ge.f32.partialorder %v2120, 0.0
    %vm2193 = vcmp.ge.f32.partialorder %v2122, 0.0
    %vm2194 = vcmp.ge.f32.partialorder %v2126, 0.0
    %vm2195 = vcmp.ge.f32.partialorder %v2128, 0.0
    %vm2196 = vcmp.ge.f32.partialorder %v2130, 0.0
    %vm2197 = vcmp.ge.f32.partialorder %v2132, 0.0
    %v2198 = vmul.f32 %v1976, 0.02
    %v2199 = vmul.f32 %v1978, 0.02
    %v2200 = vmul.f32 %v1980, 0.02
    %v2201 = vmul.f32 %v1982, 0.02
    %v2202 = vmul.f32 %v1986, 0.02
    %v2203 = vmul.f32 %v1988, 0.02
    %v2204 = vmul.f32 %v1990, 0.02
    %v2205 = vmul.f32 %v1992, 0.02
    %v2206 = vmul.f32 %v1996, 0.02
    %v2207 = vmul.f32 %v1998, 0.02
    %v2208 = vmul.f32 %v2000, 0.02
    %v2209 = vmul.f32 %v2002, 0.02
    %v2210 = vmul.f32 %v2006, 0.02
    %v2211 = vmul.f32 %v2008, 0.02
    %v2212 = vmul.f32 %v2010, 0.02
    %v2213 = vmul.f32 %v2012, 0.02
    %v2214 = vmul.f32 %v2016, 0.02
    %v2215 = vmul.f32 %v2018, 0.02
    %v2216 = vmul.f32 %v2020, 0.02
    %v2217 = vmul.f32 %v2022, 0.02
    %v2218 = vmul.f32 %v2026, 0.02
    %v2219 = vmul.f32 %v2028, 0.02
    %v2220 = vmul.f32 %v2030, 0.02
    %v2221 = vmul.f32 %v2032, 0.02
    %v2222 = vmul.f32 %v2036, 0.02
    %v2223 = vmul.f32 %v2038, 0.02
    %v2224 = vmul.f32 %v2040, 0.02
    %v2225 = vmul.f32 %v2042, 0.02
    %v2226 = vmul.f32 %v2046, 0.02
    %v2227 = vmul.f32 %v2048, 0.02
    %v2228 = vmul.f32 %v2050, 0.02
    %v2229 = vmul.f32 %v2052, 0.02
    %v2230 = vmul.f32 %v2056, 0.02
    %v2231 = vmul.f32 %v2058, 0.02
    %v2232 = vmul.f32 %v2060, 0.02
    %v2233 = vmul.f32 %v2062, 0.02
    %v2234 = vmul.f32 %v2066, 0.02
    %v2235 = vmul.f32 %v2068, 0.02
    %v2236 = vmul.f32 %v2070, 0.02
    %v2237 = vmul.f32 %v2072, 0.02
    %v2238 = vmul.f32 %v2076, 0.02
    %v2239 = vmul.f32 %v2078, 0.02
    %v2240 = vmul.f32 %v2080, 0.02
    %v2241 = vmul.f32 %v2082, 0.02
    %v2242 = vmul.f32 %v2086, 0.02
    %v2243 = vmul.f32 %v2088, 0.02
    %v2244 = vmul.f32 %v2090, 0.02
    %v2245 = vmul.f32 %v2092, 0.02
    %v2246 = vmul.f32 %v2096, 0.02
    %v2247 = vmul.f32 %v2098, 0.02
    %v2248 = vmul.f32 %v2100, 0.02
    %v2249 = vmul.f32 %v2102, 0.02
    %v2250 = vmul.f32 %v2106, 0.02
    %v2251 = vmul.f32 %v2108, 0.02
    %v2252 = vmul.f32 %v2110, 0.02
    %v2253 = vmul.f32 %v2112, 0.02
    %v2254 = vmul.f32 %v2116, 0.02
    %v2255 = vmul.f32 %v2118, 0.02
    %v2256 = vmul.f32 %v2120, 0.02
    %v2257 = vmul.f32 %v2122, 0.02
    %v2258 = vmul.f32 %v2126, 0.02
    %v2259 = vmul.f32 %v2128, 0.02
    %v2260 = vmul.f32 %v2130, 0.02
    %v2261 = vmul.f32 %v2132, 0.02
    %v2262 = vsel %vm2134, %v1976, %v2198
    %v2263 = vsel %vm2135, %v1978, %v2199
    %v2264 = vsel %vm2136, %v1980, %v2200
    %v2265 = vsel %vm2137, %v1982, %v2201
    %v2266 = vsel %vm2138, %v1986, %v2202
    %v2267 = vsel %vm2139, %v1988, %v2203
    %v2268 = vsel %vm2140, %v1990, %v2204
    %v2269 = vsel %vm2141, %v1992, %v2205
    %v2270 = vsel %vm2142, %v1996, %v2206
    %v2271 = vsel %vm2143, %v1998, %v2207
    %v2272 = vsel %vm2144, %v2000, %v2208
    %v2273 = vsel %vm2145, %v2002, %v2209
    %v2274 = vsel %vm2146, %v2006, %v2210
    %v2275 = vsel %vm2147, %v2008, %v2211
    %v2276 = vsel %vm2148, %v2010, %v2212
    %v2277 = vsel %vm2149, %v2012, %v2213
    %v2278 = vsel %vm2150, %v2016, %v2214
    %v2279 = vsel %vm2151, %v2018, %v2215
    %v2280 = vsel %vm2152, %v2020, %v2216
    %v2281 = vsel %vm2153, %v2022, %v2217
    %v2282 = vsel %vm2154, %v2026, %v2218
    %v2283 = vsel %vm2155, %v2028, %v2219
    %v2284 = vsel %vm2156, %v2030, %v2220
    %v2285 = vsel %vm2157, %v2032, %v2221
    %v2286 = vsel %vm2158, %v2036, %v2222
    %v2287 = vsel %vm2159, %v2038, %v2223
    %v2288 = vsel %vm2160, %v2040, %v2224
    %v2289 = vsel %vm2161, %v2042, %v2225
    %v2290 = vsel %vm2162, %v2046, %v2226
    %v2291 = vsel %vm2163, %v2048, %v2227
    %v2292 = vsel %vm2164, %v2050, %v2228
    %v2293 = vsel %vm2165, %v2052, %v2229
    %v2294 = vsel %vm2166, %v2056, %v2230
    %v2295 = vsel %vm2167, %v2058, %v2231
    %v2296 = vsel %vm2168, %v2060, %v2232
    %v2297 = vsel %vm2169, %v2062, %v2233
    %v2298 = vsel %vm2170, %v2066, %v2234
    %v2299 = vsel %vm2171, %v2068, %v2235
    %v2300 = vsel %vm2172, %v2070, %v2236
    %v2301 = vsel %vm2173, %v2072, %v2237
    %v2302 = vsel %vm2174, %v2076, %v2238
    %v2303 = vsel %vm2175, %v2078, %v2239
    %v2304 = vsel %vm2176, %v2080, %v2240
    %v2305 = vsel %vm2177, %v2082, %v2241
    %v2306 = vsel %vm2178, %v2086, %v2242
    %v2307 = vsel %vm2179, %v2088, %v2243
    %v2308 = vsel %vm2180, %v2090, %v2244
    %v2309 = vsel %vm2181, %v2092, %v2245
    %v2310 = vsel %vm2182, %v2096, %v2246
    %v2311 = vsel %vm2183, %v2098, %v2247
    %v2312 = vsel %vm2184, %v2100, %v2248
    %v2313 = vsel %vm2185, %v2102, %v2249
    %v2314 = vsel %vm2186, %v2106, %v2250
    %v2315 = vsel %vm2187, %v2108, %v2251
    %v2316 = vsel %vm2188, %v2110, %v2252
    %v2317 = vsel %vm2189, %v2112, %v2253
    %v2318 = vsel %vm2190, %v2116, %v2254
    %v2319 = vsel %vm2191, %v2118, %v2255
    %v2320 = vsel %vm2192, %v2120, %v2256
    %v2321 = vsel %vm2193, %v2122, %v2257
    %v2322 = vsel %vm2194, %v2126, %v2258
    %v2323 = vsel %vm2195, %v2128, %v2259
    %v2324 = vsel %vm2196, %v2130, %v2260
    %v2325 = vsel %vm2197, %v2132, %v2261
    %v2326 = vpack.c.bf16 %v2264, %v2262
    %v2327 = vpack.c.bf16 %v2265, %v2263
    %v2328 = vpack.c.bf16 %v2268, %v2266
    %v2329 = vpack.c.bf16 %v2269, %v2267
    %v2330 = vpack.c.bf16 %v2272, %v2270
    %v2331 = vpack.c.bf16 %v2273, %v2271
    %v2332 = vpack.c.bf16 %v2276, %v2274
    %v2333 = vpack.c.bf16 %v2277, %v2275
    %v2334 = vpack.c.bf16 %v2280, %v2278
    %v2335 = vpack.c.bf16 %v2281, %v2279
    %v2336 = vpack.c.bf16 %v2284, %v2282
    %v2337 = vpack.c.bf16 %v2285, %v2283
    %v2338 = vpack.c.bf16 %v2288, %v2286
    %v2339 = vpack.c.bf16 %v2289, %v2287
    %v2340 = vpack.c.bf16 %v2292, %v2290
    %v2341 = vpack.c.bf16 %v2293, %v2291
    %v2342 = vpack.c.bf16 %v2296, %v2294
    %v2343 = vpack.c.bf16 %v2297, %v2295
    %v2344 = vpack.c.bf16 %v2300, %v2298
    %v2345 = vpack.c.bf16 %v2301, %v2299
    %v2346 = vpack.c.bf16 %v2304, %v2302
    %v2347 = vpack.c.bf16 %v2305, %v2303
    %v2348 = vpack.c.bf16 %v2308, %v2306
    %v2349 = vpack.c.bf16 %v2309, %v2307
    %v2350 = vpack.c.bf16 %v2312, %v2310
    %v2351 = vpack.c.bf16 %v2313, %v2311
    %v2352 = vpack.c.bf16 %v2316, %v2314
    %v2353 = vpack.c.bf16 %v2317, %v2315
    %v2354 = vpack.c.bf16 %v2320, %v2318
    %v2355 = vpack.c.bf16 %v2321, %v2319
    %v2356 = vpack.c.bf16 %v2324, %v2322
    %v2357 = vpack.c.bf16 %v2325, %v2323
    %v2358 = vld [vmem:[%s5] sm:$0x3]
    %v2359 = vld [vmem:[#allocation2] sm:$0x1]
    %2361 = vset.pattern.permute.xlu0 0
    %2362 = vperm.xlu0 %2361, %v2359
    %v2363 = vpop.permute.xlu0 %2362
    %v2365 = vlaneseq
    %v2366 = vshrl.u32 %v2365, 7
    %v2367 = vsub.s32 0, %v2366
    %v2368 = vrot.slane %v2363, %v2367
    %v2371 = vunpack.c.l.s4 1966171168
    %v2372 = vunpack.c.0.s8 %v2371
    %v2373 = vlaneseq
    %v2374 = vshrl.u32 %v2373, 7
    %v2375 = vsub.s32 %v2372, %v2374
    %v2376 = vrot.slane %v2358, %v2375
    %v2377 = vcombine.high %v2376, %v2376
    %v2379 = vunpack.c.l.s4 1966171168
    %v2380 = vunpack.c.0.s8 %v2379
    %v2381 = vlaneseq
    %v2382 = vshrl.u32 %v2381, 7
    %v2383 = vsub.s32 %v2380, %v2382
    %v2384 = vrot.slane %v2376, %v2383
    %v2386 = vunpack.c.l.s4 1966171168
    %v2387 = vunpack.c.0.s8 %v2386
    %v2388 = vlaneseq
    %v2389 = vshrl.u32 %v2388, 7
    %v2390 = vsub.s32 %v2387, %v2389
    %v2391 = vrot.slane %v2377, %v2390
    %2394 = vmatprep.subr.bf16.mxu0 %v2327
    %2395 = vmatpush1.bf16.xpose.msra.mxu0 %v2326
    %2396 = vmatprep.subr.bf16.mxu0 %v2329
    %2397 = vmatpush1.bf16.xpose.msra.mxu0 %v2328
    %2398 = vmatprep.subr.bf16.mxu0 %v2331
    %2399 = vmatpush1.bf16.xpose.msra.mxu0 %v2330
    %2400 = vmatprep.subr.bf16.mxu0 %v2333
    %2401 = vmatpush1.bf16.xpose.msra.mxu0 %v2332
    %2402 = vmatprep.subr.bf16.mxu0 %v2335
    %2403 = vmatpush1.bf16.xpose.msra.mxu0 %v2334
    %2404 = vmatprep.subr.bf16.mxu0 %v2337
    %2405 = vmatpush1.bf16.xpose.msra.mxu0 %v2336
    %2406 = vmatprep.subr.bf16.mxu0 %v2339
    %2407 = vmatpush1.bf16.xpose.msra.mxu0 %v2338
    %2408 = vmatprep.subr.bf16.mxu0 %v2341
    %2409 = vmatpush1.bf16.xpose.msra.mxu0 %v2340
    %2410 = vmatprep.subr.bf16.mxu0 %v2343
    %2411 = vmatpush1.bf16.xpose.msra.mxu0 %v2342
    %2412 = vmatprep.subr.bf16.mxu0 %v2345
    %2413 = vmatpush1.bf16.xpose.msra.mxu0 %v2344
    %2414 = vmatprep.subr.bf16.mxu0 %v2347
    %2415 = vmatpush1.bf16.xpose.msra.mxu0 %v2346
    %2416 = vmatprep.subr.bf16.mxu0 %v2349
    %2417 = vmatpush1.bf16.xpose.msra.mxu0 %v2348
    %2418 = vmatprep.subr.bf16.mxu0 %v2351
    %2419 = vmatpush1.bf16.xpose.msra.mxu0 %v2350
    %2420 = vmatprep.subr.bf16.mxu0 %v2353
    %2421 = vmatpush1.bf16.xpose.msra.mxu0 %v2352
    %2422 = vmatprep.subr.bf16.mxu0 %v2355
    %2423 = vmatpush1.bf16.xpose.msra.mxu0 %v2354
    %2424 = vmatprep.subr.bf16.mxu0 %v2357
    %2425 = vmatpush1.bf16.xpose.msra.mxu0 %v2356
    %2426 = vmatprep.mubr.bf16.mxu0 %v2391
    %2427 = vmatmul.mubr.bf16.gmra.mrb[0].mxu0 %v2384
    %v2428 = vpop.f32.mrb[0].mxu0
    %v2429 = vadd.f32 %v2368, %v2428
    %v2430 = vpop.f32.mrb[0].mxu0
    %v2431 = vadd.f32 %v2368, %v2430
    %v2432 = vpop.f32.mrb[0].mxu0
    %v2433 = vpop.f32.mrb[0].mxu0
    %2434 = vdwg.mxu0
    %v2437 = vcombine.low %v2429, %v2431
    %v2439 = vunpack.c.l.s4 1966171168
    %v2440 = vunpack.c.0.s8 %v2439
    %v2441 = vlaneseq
    %v2442 = vshrl.u32 %v2441, 7
    %v2443 = vsub.s32 %v2440, %v2442
    %v2444 = vrot.slane %v2437, %v2443
    %v2446 = vunpack.c.l.s4 1966171168
    %v2447 = vunpack.c.0.s8 %v2446
    %v2448 = vlaneseq
    %v2449 = vshrl.u32 %v2448, 7
    %v2450 = vsub.s32 %v2447, %v2449
    %v2451 = vrot.slane %v2444, %v2450
    %v2453 = vlaneseq
    %vm2454 = vcmp.ge.s32.totalorder %v2453, 0
    %vm2455 = vcmp.lt.s32.totalorder %v2453, 256
    %vm2456 = vmand %vm2454, %vm2455
    %2457 = vst.msk [vmem:[#allocation3] sm:$0x3] %vm2456, %v2451
    // Predicated region
    $region30: #{tpu_custom_call.1} parent=1 // pred_check
      _
    $region31: #{tpu_custom_call.1} parent=1 // pred_check_branch
      %2459 = sbr.rel (0) target = $region33
    $region32: #{tpu_custom_call.1} parent=1 // pred_region
      %s2461 = ssub.s32 32, 32
      %2462 = vsyncadd [#allocation4], %s2461
      %s2464 = sshll.u32 [#allocation3], 4
      %s2465 = int_to_ptr.vmem [resolvable:$true] %s2464
      %2467 = dma.vmem_to_hbm [thread:$0]  %s2465, 32, %s7, [#allocation4]
    $region33: #{tpu_custom_call.1} parent=1 // pred_fallthru
      _
    // Predicated region
    $region34: #{tpu_custom_call.1} parent=1 // pred_check
      _
    $region35: #{tpu_custom_call.1} parent=1 // pred_check_branch
      %2469 = sbr.rel (0) target = $region37
    $region36: #{tpu_custom_call.1} parent=1 // pred_region
      %2470 = dma.done [#allocation4], 32
    $region37: #{tpu_custom_call.1} parent=1 // pred_fallthru
      _
    %2471 = vsyncpa [#allocation4], 1

</llo_original>
